<compile_context>
chip_gen: v6e
topology: v6e:2x2x1
jax: 0.10.0
libtpu: 0.0.40
codegen_flags: <defaults>
</compile_context>

<pallas_src>
import functools

import jax
import jax.numpy as jnp
from jax import lax
from jax.experimental import pallas as pl
from jax.experimental.pallas import tpu as pltpu


def _round_up(x, m):
    return ((x + m - 1) // m) * m


def _wce_kernel(*refs, num_classes, label_smoothing, batch, tile_batch, has_weight):
    if has_weight:
        x_ref, t_ref, w_ref, per_ref, wt_ref = refs
    else:
        x_ref, t_ref, per_ref = refs
        w_ref = wt_ref = None

    tb = x_ref.shape[0]
    C = num_classes

    x = x_ref[...].astype(jnp.float32)          # (TB, C) logits (f32 compute)
    tgt = t_ref[...]                            # (TB, 1) int32 class index

    # Ragged last block only: zero padding rows so stale VMEM can't reach exp/log.
    # (Statically compiled out when B % TB == 0 — per-review specialization.)
    if batch % tile_batch != 0:
        row = lax.broadcasted_iota(jnp.int32, (tb, 1), 0) + pl.program_id(0) * tile_batch
        x = jnp.where(row < batch, x, 0.0)

    # Row max stays a (TB,1) column and is folded out algebraically below, so the
    # outputs never need a sublane->lane relayout.
    m = jnp.max(x, axis=-1, keepdims=True)      # (TB, 1)
    xs = x - m                                  # shifted logits
    e = jnp.exp(xs)                             # (TB, C)

    col = lax.broadcasted_iota(jnp.int32, (tb, C), 1)
    sel = col == tgt                            # target one-hot as a mask (no f32 one-hot re-read)

    ones_row = jnp.ones((1, C), jnp.float32)
    nt = (((1,), (1,)), ((), ()))               # contract the class axis of both: A @ B^T
    hp = lax.Precision.HIGHEST                  # exact-f32 MXU passes

    # All class reductions ride the (otherwise idle) MXU and come out batch-on-lanes (1, TB).
    s_row = lax.dot_general(ones_row, e, nt, precision=hp,
                            preferred_element_type=jnp.float32)                  # sum_c exp(x-m)
    xst_row = lax.dot_general(ones_row, jnp.where(sel, xs, 0.0), nt,
                              precision=hp, preferred_element_type=jnp.float32)  # x[t] - m
    log_s = jnp.log(s_row)                      # == lse - m

    if has_weight:
        w_row = w_ref[...]                      # (1, C) lane-major f32 class weights
        wt_row = lax.dot_general(w_row, sel.astype(jnp.float32), nt,
                                 precision=hp, preferred_element_type=jnp.float32)  # w[t]
        nll_row = wt_row * (log_s - xst_row)
    else:
        nll_row = log_s - xst_row               # w[t] == 1

    eps = label_smoothing
    if eps > 0.0:
        if has_weight:
            wsum = jnp.sum(w_row)
            xsw_row = lax.dot_general(w_row, xs, nt, precision=hp,
                                      preferred_element_type=jnp.float32)        # sum_c w_c (x-m)
        else:
            wsum = float(num_classes)
            xsw_row = lax.dot_general(ones_row, xs, nt, precision=hp,
                                      preferred_element_type=jnp.float32)
        smooth_row = wsum * log_s - xsw_row     # == -sum_c w_c * log_softmax(x)[:, c]
        per_row = (1.0 - eps) * nll_row + (eps / num_classes) * smooth_row
    else:
        per_row = nll_row

    per_ref[...] = per_row                      # lane-dense (1, TB) store
    if has_weight:
        wt_ref[...] = wt_row


def weighted_cross_entropy_loss(inputs, targets, weight=None,
                                reduction="mean", label_smoothing=0.0):
    """JAX/Pallas equivalent of WeightedCrossEntropyLoss.forward."""
    B, C = inputs.shape
    eps = float(label_smoothing)

    if targets.ndim == 2:
        if eps > 0.0:
            # Matches the module: 2-D targets are converted to indices under smoothing.
            targets = jnp.argmax(targets, axis=1)
        else:
            # TODO(synk): soft (probability) 2-D targets with label_smoothing == 0 are not implemented.
            raise NotImplementedError("2-D probability targets are not supported by this kernel.")

    has_weight = weight is not None
    t = targets.astype(jnp.int32).reshape(B, 1)     # tiny copy (B ints); logits untouched

    itemsize = jnp.dtype(inputs.dtype).itemsize
    row_align = 8 if itemsize >= 4 else (16 if itemsize == 2 else 32)

    # Batch tile sized in bytes against the f32 working set (~2 MiB), no arbitrary small cap.
    # The 2048 cap bounds the lane-padded (TB,1) target buffer and in-kernel f32 temps.
    tb = (2 * 1024 * 1024) // max(C * 4, 1)
    tb = max(row_align, (tb // row_align) * row_align)
    tb = min(tb, 2048)
    b_pad = _round_up(B, row_align)
    tb = min(tb, b_pad)
    # v7x megacore: keep the single 'parallel' batch axis at >= 2 blocks when the batch allows.
    if b_pad >= 2 * row_align and tb >= b_pad:
        tb = max(row_align, _round_up(pl.cdiv(b_pad, 2), row_align))
    nblk = pl.cdiv(B, tb)

    in_specs = [pl.BlockSpec((tb, C), lambda i: (i, 0)),
                pl.BlockSpec((tb, 1), lambda i: (i, 0))]
    args = [inputs, t]
    out_shapes = [jax.ShapeDtypeStruct((nblk, 1, tb), jnp.float32)]
    out_specs = [pl.BlockSpec((None, 1, tb), lambda i: (i, 0, 0))]
    if has_weight:
        w_row = jnp.asarray(weight, jnp.float32).reshape(1, C)   # lane-major weights
        in_specs.append(pl.BlockSpec((1, C), lambda i: (0, 0)))
        args.append(w_row)
        out_shapes.append(jax.ShapeDtypeStruct((nblk, 1, tb), jnp.float32))
        out_specs.append(pl.BlockSpec((None, 1, tb), lambda i: (i, 0, 0)))

    # Explicit VMEM budget: 2x input blocks + ~6 (TB,C) f32 live temps + padded target
    # buffers + weight row + lane-dense outputs + headroom.  Clamped for v5e/v7x safety.
    block_in = tb * C * itemsize
    block_f32 = tb * C * 4
    vmem_est = (2 * block_in + 6 * block_f32 + 2 * tb * 512
                + 4 * 8 * _round_up(C, 128) * 4 + 8 * tb * 4 + (4 << 20))
    vmem_limit = int(min(max(vmem_est, 16 << 20), 48 << 20))

    kernel = functools.partial(_wce_kernel, num_classes=C, label_smoothing=eps,
                               batch=B, tile_batch=tb, has_weight=has_weight)

    cost = pl.CostEstimate(
        flops=int(10 * B * C),
        transcendentals=int(B * C + 2 * B),
        bytes_accessed=int(B * C * itemsize + B * 4 + 8 * nblk * tb + C * 4))

    outs = pl.pallas_call(
        kernel,
        out_shape=tuple(out_shapes),
        grid_spec=pltpu.PrefetchScalarGridSpec(
            num_scalar_prefetch=0,
            grid=(nblk,),
            in_specs=in_specs,
            out_specs=out_specs),
        compiler_params=pltpu.CompilerParams(
            dimension_semantics=("parallel",),
            vmem_limit_bytes=vmem_limit),
        cost_estimate=cost,
    )(*args)

    if has_weight:
        per_blocks, wt_blocks = outs
    else:
        per_blocks = outs[0] if isinstance(outs, (list, tuple)) else outs

    per = per_blocks.reshape(-1)[:B]
    if reduction == "none":
        return per
    total = jnp.sum(per)
    if reduction == "sum":
        return total
    if reduction != "mean":
        raise ValueError(f"Unknown reduction: {reduction!r}")
    if has_weight:
        # PyTorch 'mean' normalizes by the sum of target-class weights.
        return total / jnp.sum(wt_blocks.reshape(-1)[:B])
    return total / B


def _reference_loss(inputs, targets, weight, reduction, label_smoothing):
    """Plain-JAX reference mirroring F.cross_entropy semantics."""
    B, C = inputs.shape
    w = jnp.ones((C,), jnp.float32) if weight is None else jnp.asarray(weight, jnp.float32)
    lsm = jax.nn.log_softmax(inputs.astype(jnp.float32), axis=-1)
    nll = -w[targets] * lsm[jnp.arange(B), targets]
    smooth = -jnp.sum(w[None, :] * lsm, axis=-1)
    per = (1.0 - label_smoothing) * nll + (label_smoothing / C) * smooth
    if reduction == "none":
        return per
    if reduction == "sum":
        return jnp.sum(per)
    return jnp.sum(per) / jnp.sum(w[targets])


if __name__ == "__main__":
    key = jax.random.PRNGKey(0)
    B, C = 16, 10
    k1, k2 = jax.random.split(key)
    logits = jax.random.normal(k1, (B, C), dtype=jnp.float32)
    targets = jax.random.randint(k2, (B,), 0, C, dtype=jnp.int32)
    class_weight = jnp.linspace(0.5, 1.5, C, dtype=jnp.float32)
    label_smoothing = 0.1

    # Weighted + smoothed, all reductions.
    for red in ("mean", "sum", "none"):
        out = jax.block_until_ready(
            weighted_cross_entropy_loss(logits, targets, weight=class_weight,
                                        reduction=red, label_smoothing=label_smoothing))
        ref = _reference_loss(logits, targets, class_weight, red, label_smoothing)
        assert jnp.allclose(out, ref, rtol=1e-5, atol=1e-5), (red, out, ref)

    # Default-config path (weight=None, no smoothing) — exercises the no-weight specialization.
    out2 = jax.block_until_ready(weighted_cross_entropy_loss(logits, targets))
    ref2 = _reference_loss(logits, targets, None, "mean", 0.0)
    assert jnp.allclose(out2, ref2, rtol=1e-5, atol=1e-5), (out2, ref2)

    # No weight but with smoothing.
    out2b = jax.block_until_ready(
        weighted_cross_entropy_loss(logits, targets, reduction="mean",
                                    label_smoothing=label_smoothing))
    ref2b = _reference_loss(logits, targets, None, "mean", label_smoothing)
    assert jnp.allclose(out2b, ref2b, rtol=1e-5, atol=1e-5), (out2b, ref2b)

    # 2-D one-hot targets with smoothing: module converts them to indices via argmax.
    targets_2d = jax.nn.one_hot(targets, C, dtype=jnp.float32)
    out2c = jax.block_until_ready(
        weighted_cross_entropy_loss(logits, targets_2d, weight=class_weight,
                                    reduction="mean", label_smoothing=label_smoothing))
    ref2c = _reference_loss(logits, targets, class_weight, "mean", label_smoothing)
    assert jnp.allclose(out2c, ref2c, rtol=1e-5, atol=1e-5), (out2c, ref2c)

    # Ragged batch (B not a multiple of the tile) exercises the in-kernel valid-row mask.
    Br = 13
    logits_r = jax.random.normal(jax.random.PRNGKey(1), (Br, C), dtype=jnp.float32)
    targets_r = jax.random.randint(jax.random.PRNGKey(2), (Br,), 0, C, dtype=jnp.int32)
    out3 = jax.block_until_ready(
        weighted_cross_entropy_loss(logits_r, targets_r, weight=class_weight,
                                    reduction="mean", label_smoothing=label_smoothing))
    ref3 = _reference_loss(logits_r, targets_r, class_weight, "mean", label_smoothing)
    assert jnp.allclose(out3, ref3, rtol=1e-5, atol=1e-5), (out3, ref3)

    # bf16 logits pass straight through the call boundary (cast to f32 inside the kernel).
    logits_bf = logits.astype(jnp.bfloat16)
    out4 = jax.block_until_ready(
        weighted_cross_entropy_loss(logits_bf, targets, weight=class_weight,
                                    reduction="mean", label_smoothing=label_smoothing))
    ref4 = _reference_loss(logits_bf.astype(jnp.float32), targets, class_weight,
                           "mean", label_smoothing)
    assert jnp.allclose(out4, ref4, rtol=1e-5, atol=1e-5), (out4, ref4)

    print("KERNEL_OK")
</pallas_src>

<mosaic_0001>
module attributes {stable_mosaic.version = 11 : i64} {
  func.func @_wce_kernel(%arg0: i32, %arg1: memref<8x10xf32, #tpu.memory_space<vmem>>, %arg2: memref<8x1xi32, #tpu.memory_space<vmem>>, %arg3: memref<1x10xf32, #tpu.memory_space<vmem>>, %arg4: memref<1x1x8xf32, #tpu.memory_space<vmem>>, %arg5: memref<1x1x8xf32, #tpu.memory_space<vmem>>) attributes {dimension_semantics = [#tpu.dimension_semantics<parallel>], iteration_bounds = array<i64: 2>, scalar_prefetch = 0 : i64, scratch_operands = 0 : i64, tpu.core_type = #tpu.core_type<tc>, window_params = [{transform_indices = @transform_0, window_bounds = array<i64: 8, 10>}, {transform_indices = @transform_1, window_bounds = array<i64: 8, 1>}, {pipeline_mode = #tpu.pipeline_mode<synchronous>, transform_indices = @transform_2, window_bounds = array<i64: 1, 10>}, {transform_indices = @transform_3, window_bounds = array<i64: 1, 1, 8>}, {transform_indices = @transform_4, window_bounds = array<i64: 1, 1, 8>}]} {
    %c0 = arith.constant 0 : index
    %c0_0 = arith.constant 0 : index
    %0 = vector.load %arg1[%c0, %c0_0] : memref<8x10xf32, #tpu.memory_space<vmem>>, vector<8x10xf32>
    %c0_1 = arith.constant 0 : index
    %c0_2 = arith.constant 0 : index
    %1 = vector.load %arg2[%c0_1, %c0_2] : memref<8x1xi32, #tpu.memory_space<vmem>>, vector<8x1xi32>
    %cst = arith.constant dense<0xFF800000> : vector<8xf32>
    %2 = vector.multi_reduction <maximumf>, %0, %cst [1] : vector<8x10xf32> to vector<8xf32>
    %3 = vector.shape_cast %2 : vector<8xf32> to vector<8x1xf32>
    %4 = vector.broadcast %3 : vector<8x1xf32> to vector<8x10xf32>
    %5 = arith.subf %0, %4 : vector<8x10xf32>
    %6 = math.exp %5 : vector<8x10xf32>
    %7 = tpu.iota {dimensions = array<i32: 1>} : vector<8x10xi32>
    %8 = vector.broadcast %1 : vector<8x1xi32> to vector<8x10xi32>
    %9 = arith.cmpi eq, %7, %8 : vector<8x10xi32>
    %cst_3 = arith.constant 1.000000e+00 : f32
    %10 = vector.broadcast %cst_3 : f32 to vector<1x10xf32>
    %cst_4 = arith.constant dense<0.000000e+00> : vector<1x8xf32>
    %11 = tpu.matmul %10, %6, %cst_4 {dimension_numbers = #tpu.dot_dimension_numbers<[1], [1], [0], [0], [0, 0, 1, 0], [], []>, precision = #tpu.contract_precision<fp32>} : vector<1x10xf32>, vector<8x10xf32>, vector<1x8xf32> -> vector<1x8xf32>
    %cst_5 = arith.constant 0.000000e+00 : f32
    %12 = vector.broadcast %cst_5 : f32 to vector<8x10xf32>
    %13 = arith.select %9, %5, %12 : vector<8x10xi1>, vector<8x10xf32>
    %cst_6 = arith.constant dense<0.000000e+00> : vector<1x8xf32>
    %14 = tpu.matmul %10, %13, %cst_6 {dimension_numbers = #tpu.dot_dimension_numbers<[1], [1], [0], [0], [0, 0, 1, 0], [], []>, precision = #tpu.contract_precision<fp32>} : vector<1x10xf32>, vector<8x10xf32>, vector<1x8xf32> -> vector<1x8xf32>
    %15 = math.log %11 : vector<1x8xf32>
    %c0_7 = arith.constant 0 : index
    %c0_8 = arith.constant 0 : index
    %16 = vector.load %arg3[%c0_7, %c0_8] : memref<1x10xf32, #tpu.memory_space<vmem>>, vector<1x10xf32>
    %17 = arith.extui %9 : vector<8x10xi1> to vector<8x10xi32>
    %18 = arith.sitofp %17 : vector<8x10xi32> to vector<8x10xf32>
    %cst_9 = arith.constant dense<0.000000e+00> : vector<1x8xf32>
    %19 = tpu.matmul %16, %18, %cst_9 {dimension_numbers = #tpu.dot_dimension_numbers<[1], [1], [0], [0], [0, 0, 1, 0], [], []>, precision = #tpu.contract_precision<fp32>} : vector<1x10xf32>, vector<8x10xf32>, vector<1x8xf32> -> vector<1x8xf32>
    %20 = arith.subf %15, %14 : vector<1x8xf32>
    %21 = arith.mulf %19, %20 : vector<1x8xf32>
    %22 = vector.shape_cast %16 : vector<1x10xf32> to vector<1x1x10xf32>
    %cst_10 = arith.constant dense<0.000000e+00> : vector<1xf32>
    %23 = vector.multi_reduction <add>, %22, %cst_10 [1, 2] : vector<1x1x10xf32> to vector<1xf32>
    %24 = vector.shape_cast %23 : vector<1xf32> to vector<1x1x1xf32>
    %25 = vector.extract %24[0, 0, 0] : f32 from vector<1x1x1xf32>
    %cst_11 = arith.constant dense<0.000000e+00> : vector<1x8xf32>
    %26 = tpu.matmul %16, %5, %cst_11 {dimension_numbers = #tpu.dot_dimension_numbers<[1], [1], [0], [0], [0, 0, 1, 0], [], []>, precision = #tpu.contract_precision<fp32>} : vector<1x10xf32>, vector<8x10xf32>, vector<1x8xf32> -> vector<1x8xf32>
    %27 = vector.broadcast %25 : f32 to vector<1x8xf32>
    %28 = arith.mulf %27, %15 : vector<1x8xf32>
    %29 = arith.subf %28, %26 : vector<1x8xf32>
    %cst_12 = arith.constant 0.899999976 : f32
    %30 = vector.broadcast %cst_12 : f32 to vector<1x8xf32>
    %31 = arith.mulf %30, %21 : vector<1x8xf32>
    %cst_13 = arith.constant 0.00999999977 : f32
    %32 = vector.broadcast %cst_13 : f32 to vector<1x8xf32>
    %33 = arith.mulf %32, %29 : vector<1x8xf32>
    %34 = arith.addf %31, %33 : vector<1x8xf32>
    %c0_14 = arith.constant 0 : index
    %c0_15 = arith.constant 0 : index
    %c0_16 = arith.constant 0 : index
    %35 = vector.load %arg4[%c0_14, %c0_15, %c0_16] : memref<1x1x8xf32, #tpu.memory_space<vmem>>, vector<1x1x8xf32>
    %36 = vector.shape_cast %35 : vector<1x1x8xf32> to vector<1x8xf32>
    %37 = vector.shape_cast %34 : vector<1x8xf32> to vector<1x1x8xf32>
    tpu.vector_store %arg4[%c0_14, %c0_15, %c0_16], %37 {strides = array<i32>} : memref<1x1x8xf32, #tpu.memory_space<vmem>>, vector<1x1x8xf32>,
    %c0_17 = arith.constant 0 : index
    %c0_18 = arith.constant 0 : index
    %c0_19 = arith.constant 0 : index
    %38 = vector.load %arg5[%c0_17, %c0_18, %c0_19] : memref<1x1x8xf32, #tpu.memory_space<vmem>>, vector<1x1x8xf32>
    %39 = vector.shape_cast %38 : vector<1x1x8xf32> to vector<1x8xf32>
    %40 = vector.shape_cast %19 : vector<1x8xf32> to vector<1x1x8xf32>
    tpu.vector_store %arg5[%c0_17, %c0_18, %c0_19], %40 {strides = array<i32>} : memref<1x1x8xf32, #tpu.memory_space<vmem>>, vector<1x1x8xf32>,
    return
  }
  func.func @transform_0(%arg0: i32) -> (i32, i32) {
    %c0_i32 = arith.constant 0 : i32
    %c0_i32_0 = arith.constant 0 : i32
    return %arg0, %c0_i32 : i32, i32
  }
  func.func @transform_1(%arg0: i32) -> (i32, i32) {
    %c0_i32 = arith.constant 0 : i32
    %c0_i32_0 = arith.constant 0 : i32
    return %arg0, %c0_i32 : i32, i32
  }
  func.func @transform_2(%arg0: i32) -> (i32, i32) {
    %c0_i32 = arith.constant 0 : i32
    %c0_i32_0 = arith.constant 0 : i32
    %c0_i32_1 = arith.constant 0 : i32
    return %c0_i32, %c0_i32_0 : i32, i32
  }
  func.func @transform_3(%arg0: i32) -> (i32, i32, i32) {
    %c0_i32 = arith.constant 0 : i32
    %c0_i32_0 = arith.constant 0 : i32
    %c0_i32_1 = arith.constant 0 : i32
    return %arg0, %c0_i32, %c0_i32_0 : i32, i32, i32
  }
  func.func @transform_4(%arg0: i32) -> (i32, i32, i32) {
    %c0_i32 = arith.constant 0 : i32
    %c0_i32_0 = arith.constant 0 : i32
    %c0_i32_1 = arith.constant 0 : i32
    return %arg0, %c0_i32, %c0_i32_0 : i32, i32, i32
  }
}

</mosaic_0001>

<llo_original>
// kernel: tpu_custom_call.1
$region0: #{tpu_custom_call.1}
  #allocation0 [shape = 'u32[]', space=smem, size = 0x4, offset = 0x4, fixed_abs, tag = 'smem constant byte address 0x4 - core index']
  #allocation1 [shape = 'u32[144,128]{1,0:T(1,128)}', space=vmem, size = 0x12000, scoped, tag = 'internal scratch']
  %s0 = inlined_call_operand.vmem [shape: f32[16,10], index: 0, kind: input, shape index: {}]
  %s1 = inlined_call_operand.vmem [shape: s32[16,1], index: 1, kind: input, shape index: {}]
  %s2 = inlined_call_operand.vmem [shape: f32[1,10], index: 2, kind: input, shape index: {}]
  %s3 = inlined_call_operand.hbm [shape: f32[2,1,8], index: 3, kind: output, shape index: {0}]
  %s4 = inlined_call_operand.hbm [shape: f32[2,1,8], index: 4, kind: output, shape index: {1}]
  %5 = xla_tuple %s3, %s4
  %s6 = sld [smem:[#allocation0]]
  $region53: #{tpu_custom_call.1} parent=0
    _
  %s8 = ssub.s32 1, %s6
  %s9 = scalar_select 0, %s8, %s6
  $region1: #{tpu_custom_call.1} parent=0
    #allocation2 [shape = 'u8[1024]{0}', space=vmem, size = 0x400, scoped, tag = 'output window, operand 0']
    #allocation3 [shape = 's32[2]{0}', space=sflag, size = 0x8, scoped, tag = 'scoped memory for tpu_custom_call.1']
    #allocation4 [shape = 'u8[1024]{0}', space=vmem, size = 0x400, scoped, tag = 'output window, operand 1']
    #allocation5 [shape = 's32[2]{0}', space=sflag, size = 0x8, scoped, tag = 'scoped memory for tpu_custom_call.1']
    %10 = vsyncpa [#allocation3], 0
    %s11 = scalar_lea.sflag [#allocation3], 1
    %12 = vsyncpa %s11, 0
    %13 = vsyncpa [#allocation5], 0
    %s14 = scalar_lea.sflag [#allocation5], 1
    %15 = vsyncpa %s14, 0
    loop: start=0, step=1, limit=4
    $region2: #{tpu_custom_call.1} parent=1 // loop_pre_header
      _
    $region3: #{tpu_custom_call.1} parent=1 // loop_header
      %s17 = sphi 0, %s21
      %p18 = scmp.ge.s32.totalorder %s17, 4
      %s27 = sphi 0, %s29
      %s30 = sphi 0, %s27
      %s31 = sphi 0, %s30
      %s47 = sphi 0, %s31
      %s53 = sphi 0, %s55
      %s56 = sphi 0, %s53
      %s57 = sphi 0, %s56
      %s73 = sphi 0, %s57
      %s77 = sphi 0, %s77
      %s79 = sphi 0, %s77
      %s80 = sphi 0, %s79
      %s94 = sphi 0, %s80
      %s100 = sphi 0, %s102
      %s103 = sphi 0, %s100
      %s104 = sphi 0, %s103
      %s120 = sphi 0, %s104
      %s126 = sphi 0, %s128
      %s129 = sphi 0, %s126
      %s130 = sphi 0, %s129
      %s146 = sphi 0, %s130
    $region4: #{tpu_custom_call.1} parent=1 // loop_header_branch
      %20 = sbr.rel (%p18) target = $region8
    $region5: #{tpu_custom_call.1} parent=1 // loop_body
      %s22 = ssub.s32 %s17, 1
      %s23 = ssub.s32 %s17, 2
      %s24 = sadd.s32 %s17, 1
      %s25 = ssub.s32 %s17, %s24
      %p26 = scmp.eq.s32.totalorder %s25, 0
      %s28 = sadd.s32 %s27, 1
      %s29 = scalar_select %p26, %s27, %s28
      %p32 = pneg %p26
      %p33 = scmp.eq.s32.totalorder %s17, 1
      %p34 = por %p32, %p33
      %p35 = scmp.ne.s32.totalorder %s27, %s30
      %p36 = scmp.eq.s32.totalorder %s17, 0
      %p37 = por %p35, %p36
      %p38 = scmp.ne.s32.totalorder %s27, %s30
      %p39 = scmp.eq.s32.totalorder %s22, 1
      %p40 = por %p38, %p39
      %p41 = scmp.ne.s32.totalorder %s30, %s31
      %p42 = scmp.eq.s32.totalorder %s22, 0
      %p43 = por %p41, %p42
      %p44 = scmp.ne.s32.totalorder %s30, %s31
      %p45 = scmp.eq.s32.totalorder %s23, 1
      %p46 = por %p44, %p45
      %p48 = scmp.ne.s32.totalorder %s31, %s47
      %p49 = scmp.eq.s32.totalorder %s23, 0
      %p50 = por %p48, %p49
      %s51 = ssub.s32 %s17, %s24
      %p52 = scmp.eq.s32.totalorder %s51, 0
      %s54 = sadd.s32 %s53, 1
      %s55 = scalar_select %p52, %s53, %s54
      %p58 = pneg %p52
      %p59 = scmp.eq.s32.totalorder %s17, 1
      %p60 = por %p58, %p59
      %p61 = scmp.ne.s32.totalorder %s53, %s56
      %p62 = scmp.eq.s32.totalorder %s17, 0
      %p63 = por %p61, %p62
      %p64 = scmp.ne.s32.totalorder %s53, %s56
      %p65 = scmp.eq.s32.totalorder %s22, 1
      %p66 = por %p64, %p65
      %p67 = scmp.ne.s32.totalorder %s56, %s57
      %p68 = scmp.eq.s32.totalorder %s22, 0
      %p69 = por %p67, %p68
      %p70 = scmp.ne.s32.totalorder %s56, %s57
      %p71 = scmp.eq.s32.totalorder %s23, 1
      %p72 = por %p70, %p71
      %p74 = scmp.ne.s32.totalorder %s57, %s73
      %p75 = scmp.eq.s32.totalorder %s23, 0
      %p76 = por %p74, %p75
      %s78 = sadd.s32 %s77, 1
      %p81 = scmp.eq.s32.totalorder %s17, 1
      %p82 = scmp.ne.s32.totalorder %s77, %s79
      %p83 = scmp.eq.s32.totalorder %s17, 0
      %p84 = por %p82, %p83
      %p85 = scmp.ne.s32.totalorder %s77, %s79
      %p86 = scmp.eq.s32.totalorder %s22, 1
      %p87 = por %p85, %p86
      %p88 = scmp.ne.s32.totalorder %s79, %s80
      %p89 = scmp.eq.s32.totalorder %s22, 0
      %p90 = por %p88, %p89
      %p91 = scmp.ne.s32.totalorder %s79, %s80
      %p92 = scmp.eq.s32.totalorder %s23, 1
      %p93 = por %p91, %p92
      %p95 = scmp.ne.s32.totalorder %s80, %s94
      %p96 = scmp.eq.s32.totalorder %s23, 0
      %p97 = por %p95, %p96
      %s98 = ssub.s32 %s17, %s24
      %p99 = scmp.eq.s32.totalorder %s98, 0
      %s101 = sadd.s32 %s100, 1
      %s102 = scalar_select %p99, %s100, %s101
      %p105 = pneg %p99
      %p106 = scmp.eq.s32.totalorder %s17, 1
      %p107 = por %p105, %p106
      %p108 = scmp.ne.s32.totalorder %s100, %s103
      %p109 = scmp.eq.s32.totalorder %s17, 0
      %p110 = por %p108, %p109
      %p111 = scmp.ne.s32.totalorder %s100, %s103
      %p112 = scmp.eq.s32.totalorder %s22, 1
      %p113 = por %p111, %p112
      %p114 = scmp.ne.s32.totalorder %s103, %s104
      %p115 = scmp.eq.s32.totalorder %s22, 0
      %p116 = por %p114, %p115
      %p117 = scmp.ne.s32.totalorder %s103, %s104
      %p118 = scmp.eq.s32.totalorder %s23, 1
      %p119 = por %p117, %p118
      %p121 = scmp.ne.s32.totalorder %s104, %s120
      %p122 = scmp.eq.s32.totalorder %s23, 0
      %p123 = por %p121, %p122
      %s124 = ssub.s32 %s17, %s24
      %p125 = scmp.eq.s32.totalorder %s124, 0
      %s127 = sadd.s32 %s126, 1
      %s128 = scalar_select %p125, %s126, %s127
      %p131 = pneg %p125
      %p132 = scmp.eq.s32.totalorder %s17, 1
      %p133 = por %p131, %p132
      %p134 = scmp.ne.s32.totalorder %s126, %s129
      %p135 = scmp.eq.s32.totalorder %s17, 0
      %p136 = por %p134, %p135
      %p137 = scmp.ne.s32.totalorder %s126, %s129
      %p138 = scmp.eq.s32.totalorder %s22, 1
      %p139 = por %p137, %p138
      %p140 = scmp.ne.s32.totalorder %s129, %s130
      %p141 = scmp.eq.s32.totalorder %s22, 0
      %p142 = por %p140, %p141
      %p143 = scmp.ne.s32.totalorder %s129, %s130
      %p144 = scmp.eq.s32.totalorder %s23, 1
      %p145 = por %p143, %p144
      %p147 = scmp.ne.s32.totalorder %s130, %s146
      %p148 = scmp.eq.s32.totalorder %s23, 0
      %p149 = por %p147, %p148
      %p150 = scmp.le.s32.totalorder 1, %s17
      %p151 = scmp.lt.s32.totalorder %s17, 3
      %p152 = pnand %p150, %p151
      %p153 = pneg %p152
      // Predicated region
      $region9: #{tpu_custom_call.1} parent=5 // pred_check
        _
      $region10: #{tpu_custom_call.1} parent=5 // pred_check_branch
        %155 = sbr.rel (%p152) target = $region12
      $region11: #{tpu_custom_call.1} parent=5 // pred_region
        %s156 = ssub.s32 %s17, 1
        // Predicated region
        $region13: #{tpu_custom_call.1} parent=11 // pred_check
          %p157 = pneg %p90
        $region14: #{tpu_custom_call.1} parent=11 // pred_check_branch
          %159 = sbr.rel (%p157) target = $region16
        $region15: #{tpu_custom_call.1} parent=11 // pred_region
          _
        $region16: #{tpu_custom_call.1} parent=11 // pred_fallthru
          _
      $region12: #{tpu_custom_call.1} parent=5 // pred_fallthru
        _
      %p160 = scmp.lt.s32.totalorder %s17, 2
      // Predicated region
      $region17: #{tpu_custom_call.1} parent=5 // pred_check
        %p161 = pneg %p160
      $region18: #{tpu_custom_call.1} parent=5 // pred_check_branch
        %163 = sbr.rel (%p161) target = $region20
      $region19: #{tpu_custom_call.1} parent=5 // pred_region
        // Predicated region
        $region21: #{tpu_custom_call.1} parent=19 // pred_check
          %p164 = pneg %p37
        $region22: #{tpu_custom_call.1} parent=19 // pred_check_branch
          %166 = sbr.rel (%p164) target = $region24
        $region23: #{tpu_custom_call.1} parent=19 // pred_region
          %p167 = scmp.lt.s32.totalorder %s17, 1
          %s168 = scalar_select %p167, %s17, 1
          %s169 = smul.addr %s168, 8
          %s170 = scalar_lea.vmem %s0, %s169
        $region24: #{tpu_custom_call.1} parent=19 // pred_fallthru
          _
        // Predicated region
        $region25: #{tpu_custom_call.1} parent=19 // pred_check
          %p171 = pneg %p63
        $region26: #{tpu_custom_call.1} parent=19 // pred_check_branch
          %173 = sbr.rel (%p171) target = $region28
        $region27: #{tpu_custom_call.1} parent=19 // pred_region
          %p174 = scmp.lt.s32.totalorder %s17, 1
          %s175 = scalar_select %p174, %s17, 1
          %s176 = smul.addr %s175, 8
          %s177 = scalar_lea.vmem %s1, %s176
        $region28: #{tpu_custom_call.1} parent=19 // pred_fallthru
          _
      $region20: #{tpu_custom_call.1} parent=5 // pred_fallthru
        _
      %p178 = scmp.le.s32.totalorder 1, %s17
      %p179 = scmp.lt.s32.totalorder %s17, 3
      %p180 = pnand %p178, %p179
      %p181 = pneg %p180
      // Predicated region
      $region29: #{tpu_custom_call.1} parent=5 // pred_check
        _
      $region30: #{tpu_custom_call.1} parent=5 // pred_check_branch
        %183 = sbr.rel (%p180) target = $region32
      $region31: #{tpu_custom_call.1} parent=5 // pred_region
        %s184 = ssub.s32 %s17, 1
        %p185 = scmp.lt.s32.totalorder %s22, 1
        %s186 = scalar_select %p185, %s22, 1
        %s187 = smul.addr %s186, 8
        %s188 = scalar_lea.vmem %s0, %s187
        %p189 = pneg %p43
        %p190 = pneg %p40
        %p191 = scmp.lt.s32.totalorder %s22, 1
        %s192 = scalar_select %p191, %s22, 1
        %s193 = smul.addr %s192, 8
        %s194 = scalar_lea.vmem %s1, %s193
        %p195 = pneg %p69
        %p196 = pneg %p66
        %p197 = pneg %p90
        %p198 = pneg %p87
        %p199 = pneg %p116
        %p200 = pneg %p113
        %s201 = sand.u32 %s103, 1
        %s202 = scalar_lea.sflag [#allocation3], %s201
        %s203 = sand.u32 %s103, 1
        %s204 = scalar_lea.vmem [#allocation2], %s203
        %p205 = pneg %p142
        %p206 = pneg %p139
        %s207 = sand.u32 %s129, 1
        %s208 = scalar_lea.sflag [#allocation5], %s207
        %s209 = sand.u32 %s129, 1
        %s210 = scalar_lea.vmem [#allocation4], %s209
        %p211 = scmp.lt.s32.totalorder %s22, 1
        %s212 = scalar_select %p211, %s22, 1
        %s213 = smul.addr %s212, 8
        %s214 = scalar_lea.vmem %s0, %s213
        %p215 = scmp.lt.s32.totalorder %s22, 1
        %s216 = scalar_select %p215, %s22, 1
        %s217 = smul.addr %s216, 8
        %s218 = scalar_lea.vmem %s1, %s217
        %v219 = vld [vmem:[%s214] sm:$0xff]
        %v220 = vld [vmem:[%s218] sm:$0xff]
        %vm221 = vcmask 80896
        %v222 = vsel %vm221, %v219, -inf
        %223 = vmax.xlane.f32.xlu0 %v222
        %v224 = vpop.xlane.xlu0 %223
        %v225 = vsub.f32 %v219, %v224
        %v226 = vmul.f32 %v225, 1.442695
        %v227 = vpow.pop %v226
        %v228 = vlaneseq
        %v229 = vand.u32 %v228, 127
        %230 = vset.pattern.permute.xlu0 0
        %231 = vperm.xlu0 %230, %v220
        %v232 = vpop.permute.xlu0 %231
        %vm233 = vcmp.eq.s32.totalorder %v229, %v232
        %v235 = vsel %vm221, 1.0, 0
        %v238 = vsel %vm221, %v227, 0
        %240 = vmatprep.subr.mxu0 0.0
        %241 = vmatpush1.xpose.msra.mxu0 0.0
        %242 = vmatprep.subr.mxu0 0.0
        %243 = vmatpush1.xpose.msra.mxu0 0.0
        %244 = vmatprep.subr.mxu0 0.0
        %245 = vmatpush1.xpose.msra.mxu0 0.0
        %246 = vmatprep.subr.mxu0 0.0
        %247 = vmatpush1.xpose.msra.mxu0 0.0
        %248 = vmatprep.subr.mxu0 0.0
        %249 = vmatpush1.xpose.msra.mxu0 0.0
        %250 = vmatprep.subr.mxu0 0.0
        %251 = vmatpush1.xpose.msra.mxu0 0.0
        %252 = vmatprep.subr.mxu0 0.0
        %253 = vmatpush1.xpose.msra.mxu0 0.0
        %254 = vmatprep.subr.mxu0 0.0
        %255 = vmatpush1.xpose.msra.mxu0 0.0
        %256 = vmatprep.subr.mxu0 0.0
        %257 = vmatpush1.xpose.msra.mxu0 0.0
        %258 = vmatprep.subr.mxu0 0.0
        %259 = vmatpush1.xpose.msra.mxu0 0.0
        %260 = vmatprep.subr.mxu0 0.0
        %261 = vmatpush1.xpose.msra.mxu0 0.0
        %262 = vmatprep.subr.mxu0 0.0
        %263 = vmatpush1.xpose.msra.mxu0 0.0
        %264 = vmatprep.subr.mxu0 0.0
        %265 = vmatpush1.xpose.msra.mxu0 0.0
        %266 = vmatprep.subr.mxu0 0.0
        %267 = vmatpush1.xpose.msra.mxu0 0.0
        %268 = vmatprep.subr.mxu0 0.0
        %269 = vmatpush1.xpose.msra.mxu0 0.0
        %270 = vmatprep.subr.mxu0 0.0
        %v271 = vand.u32 %v238, 4294901760
        %272 = vmatpush1.xpose.msra.mxu0 %v271
        %273 = vmatprep.subr.mxu0 0.0
        %274 = vmatpush2.xpose.msra.mxu0 0.0
        %275 = vmatprep.subr.mxu0 0.0
        %276 = vmatpush2.xpose.msra.mxu0 0.0
        %277 = vmatprep.subr.mxu0 0.0
        %278 = vmatpush2.xpose.msra.mxu0 0.0
        %279 = vmatprep.subr.mxu0 0.0
        %280 = vmatpush2.xpose.msra.mxu0 0.0
        %281 = vmatprep.subr.mxu0 0.0
        %282 = vmatpush2.xpose.msra.mxu0 0.0
        %283 = vmatprep.subr.mxu0 0.0
        %284 = vmatpush2.xpose.msra.mxu0 0.0
        %285 = vmatprep.subr.mxu0 0.0
        %286 = vmatpush2.xpose.msra.mxu0 0.0
        %287 = vmatprep.subr.mxu0 0.0
        %288 = vmatpush2.xpose.msra.mxu0 0.0
        %289 = vmatprep.subr.mxu0 0.0
        %290 = vmatpush2.xpose.msra.mxu0 0.0
        %291 = vmatprep.subr.mxu0 0.0
        %292 = vmatpush2.xpose.msra.mxu0 0.0
        %293 = vmatprep.subr.mxu0 0.0
        %294 = vmatpush2.xpose.msra.mxu0 0.0
        %295 = vmatprep.subr.mxu0 0.0
        %296 = vmatpush2.xpose.msra.mxu0 0.0
        %297 = vmatprep.subr.mxu0 0.0
        %298 = vmatpush2.xpose.msra.mxu0 0.0
        %299 = vmatprep.subr.mxu0 0.0
        %300 = vmatpush2.xpose.msra.mxu0 0.0
        %301 = vmatprep.subr.mxu0 0.0
        %302 = vmatpush2.xpose.msra.mxu0 0.0
        %303 = vmatprep.subr.mxu0 0.0
        %304 = vmatpush2.xpose.msra.mxu0 0.0
        %305 = vmatprep.mubr.f32.mxu0 0.0
        %v306 = vand.u32 %v235, 4294901760
        %v307 = vsub.f32 %v235, %v306
        %v308 = vand.u32 %v307, 4294901760
        %v309 = vsub.f32 %v307, %v308
        %v310 = vand.u32 %v309, 4294901760
        %311 = vmatmul.mubr.f32.gmra.mxu0 %v310
        %v312 = vpop.f32.mrf.mxu0
        %v313 = vadd.f32 0.0, %v312
        %v314 = vpop.f32.mrf.mxu0
        %315 = vdwg.mxu0
        %316 = vmatprep.subr.mxu0 0.0
        %317 = vmatpush1.xpose.msra.mxu0 0.0
        %318 = vmatprep.subr.mxu0 0.0
        %319 = vmatpush1.xpose.msra.mxu0 0.0
        %320 = vmatprep.subr.mxu0 0.0
        %321 = vmatpush1.xpose.msra.mxu0 0.0
        %322 = vmatprep.subr.mxu0 0.0
        %323 = vmatpush1.xpose.msra.mxu0 0.0
        %324 = vmatprep.subr.mxu0 0.0
        %325 = vmatpush1.xpose.msra.mxu0 0.0
        %326 = vmatprep.subr.mxu0 0.0
        %327 = vmatpush1.xpose.msra.mxu0 0.0
        %328 = vmatprep.subr.mxu0 0.0
        %329 = vmatpush1.xpose.msra.mxu0 0.0
        %330 = vmatprep.subr.mxu0 0.0
        %331 = vmatpush1.xpose.msra.mxu0 0.0
        %332 = vmatprep.subr.mxu0 0.0
        %333 = vmatpush1.xpose.msra.mxu0 0.0
        %334 = vmatprep.subr.mxu0 0.0
        %335 = vmatpush1.xpose.msra.mxu0 0.0
        %336 = vmatprep.subr.mxu0 0.0
        %337 = vmatpush1.xpose.msra.mxu0 0.0
        %338 = vmatprep.subr.mxu0 0.0
        %339 = vmatpush1.xpose.msra.mxu0 0.0
        %340 = vmatprep.subr.mxu0 0.0
        %341 = vmatpush1.xpose.msra.mxu0 0.0
        %342 = vmatprep.subr.mxu0 0.0
        %343 = vmatpush1.xpose.msra.mxu0 0.0
        %344 = vmatprep.subr.mxu0 0.0
        %345 = vmatpush1.xpose.msra.mxu0 0.0
        %346 = vmatprep.subr.mxu0 0.0
        %v347 = vand.u32 %v238, 4294901760
        %v348 = vsub.f32 %v238, %v347
        %v349 = vand.u32 %v348, 4294901760
        %v350 = vsub.f32 %v348, %v349
        %v351 = vand.u32 %v350, 4294901760
        %352 = vmatpush1.xpose.msra.mxu0 %v351
        %353 = vmatprep.subr.mxu0 0.0
        %354 = vmatpush2.xpose.msra.mxu0 0.0
        %355 = vmatprep.subr.mxu0 0.0
        %356 = vmatpush2.xpose.msra.mxu0 0.0
        %357 = vmatprep.subr.mxu0 0.0
        %358 = vmatpush2.xpose.msra.mxu0 0.0
        %359 = vmatprep.subr.mxu0 0.0
        %360 = vmatpush2.xpose.msra.mxu0 0.0
        %361 = vmatprep.subr.mxu0 0.0
        %362 = vmatpush2.xpose.msra.mxu0 0.0
        %363 = vmatprep.subr.mxu0 0.0
        %364 = vmatpush2.xpose.msra.mxu0 0.0
        %365 = vmatprep.subr.mxu0 0.0
        %366 = vmatpush2.xpose.msra.mxu0 0.0
        %367 = vmatprep.subr.mxu0 0.0
        %368 = vmatpush2.xpose.msra.mxu0 0.0
        %369 = vmatprep.subr.mxu0 0.0
        %370 = vmatpush2.xpose.msra.mxu0 0.0
        %371 = vmatprep.subr.mxu0 0.0
        %372 = vmatpush2.xpose.msra.mxu0 0.0
        %373 = vmatprep.subr.mxu0 0.0
        %374 = vmatpush2.xpose.msra.mxu0 0.0
        %375 = vmatprep.subr.mxu0 0.0
        %376 = vmatpush2.xpose.msra.mxu0 0.0
        %377 = vmatprep.subr.mxu0 0.0
        %378 = vmatpush2.xpose.msra.mxu0 0.0
        %379 = vmatprep.subr.mxu0 0.0
        %380 = vmatpush2.xpose.msra.mxu0 0.0
        %381 = vmatprep.subr.mxu0 0.0
        %382 = vmatpush2.xpose.msra.mxu0 0.0
        %383 = vmatprep.subr.mxu0 0.0
        %384 = vmatpush2.xpose.msra.mxu0 0.0
        %385 = vmatprep.mubr.f32.mxu0 0.0
        %v386 = vand.u32 %v235, 4294901760
        %387 = vmatmul.mubr.f32.gmra.mxu0 %v386
        %v388 = vpop.f32.mrf.mxu0
        %v389 = vadd.f32 %v313, %v388
        %v390 = vpop.f32.mrf.mxu0
        %391 = vdwg.mxu0
        %392 = vmatprep.subr.mxu0 0.0
        %393 = vmatpush1.xpose.msra.mxu0 0.0
        %394 = vmatprep.subr.mxu0 0.0
        %395 = vmatpush1.xpose.msra.mxu0 0.0
        %396 = vmatprep.subr.mxu0 0.0
        %397 = vmatpush1.xpose.msra.mxu0 0.0
        %398 = vmatprep.subr.mxu0 0.0
        %399 = vmatpush1.xpose.msra.mxu0 0.0
        %400 = vmatprep.subr.mxu0 0.0
        %401 = vmatpush1.xpose.msra.mxu0 0.0
        %402 = vmatprep.subr.mxu0 0.0
        %403 = vmatpush1.xpose.msra.mxu0 0.0
        %404 = vmatprep.subr.mxu0 0.0
        %405 = vmatpush1.xpose.msra.mxu0 0.0
        %406 = vmatprep.subr.mxu0 0.0
        %407 = vmatpush1.xpose.msra.mxu0 0.0
        %408 = vmatprep.subr.mxu0 0.0
        %409 = vmatpush1.xpose.msra.mxu0 0.0
        %410 = vmatprep.subr.mxu0 0.0
        %411 = vmatpush1.xpose.msra.mxu0 0.0
        %412 = vmatprep.subr.mxu0 0.0
        %413 = vmatpush1.xpose.msra.mxu0 0.0
        %414 = vmatprep.subr.mxu0 0.0
        %415 = vmatpush1.xpose.msra.mxu0 0.0
        %416 = vmatprep.subr.mxu0 0.0
        %417 = vmatpush1.xpose.msra.mxu0 0.0
        %418 = vmatprep.subr.mxu0 0.0
        %419 = vmatpush1.xpose.msra.mxu0 0.0
        %420 = vmatprep.subr.mxu0 0.0
        %421 = vmatpush1.xpose.msra.mxu0 0.0
        %422 = vmatprep.subr.mxu0 0.0
        %v423 = vand.u32 %v238, 4294901760
        %v424 = vsub.f32 %v238, %v423
        %425 = vmatpush1.xpose.msra.mxu0 %v424
        %426 = vmatprep.subr.mxu0 0.0
        %427 = vmatpush2.xpose.msra.mxu0 0.0
        %428 = vmatprep.subr.mxu0 0.0
        %429 = vmatpush2.xpose.msra.mxu0 0.0
        %430 = vmatprep.subr.mxu0 0.0
        %431 = vmatpush2.xpose.msra.mxu0 0.0
        %432 = vmatprep.subr.mxu0 0.0
        %433 = vmatpush2.xpose.msra.mxu0 0.0
        %434 = vmatprep.subr.mxu0 0.0
        %435 = vmatpush2.xpose.msra.mxu0 0.0
        %436 = vmatprep.subr.mxu0 0.0
        %437 = vmatpush2.xpose.msra.mxu0 0.0
        %438 = vmatprep.subr.mxu0 0.0
        %439 = vmatpush2.xpose.msra.mxu0 0.0
        %440 = vmatprep.subr.mxu0 0.0
        %441 = vmatpush2.xpose.msra.mxu0 0.0
        %442 = vmatprep.subr.mxu0 0.0
        %443 = vmatpush2.xpose.msra.mxu0 0.0
        %444 = vmatprep.subr.mxu0 0.0
        %445 = vmatpush2.xpose.msra.mxu0 0.0
        %446 = vmatprep.subr.mxu0 0.0
        %447 = vmatpush2.xpose.msra.mxu0 0.0
        %448 = vmatprep.subr.mxu0 0.0
        %449 = vmatpush2.xpose.msra.mxu0 0.0
        %450 = vmatprep.subr.mxu0 0.0
        %451 = vmatpush2.xpose.msra.mxu0 0.0
        %452 = vmatprep.subr.mxu0 0.0
        %453 = vmatpush2.xpose.msra.mxu0 0.0
        %454 = vmatprep.subr.mxu0 0.0
        %455 = vmatpush2.xpose.msra.mxu0 0.0
        %456 = vmatprep.subr.mxu0 0.0
        %457 = vmatpush2.xpose.msra.mxu0 0.0
        %458 = vmatprep.mubr.f32.mxu0 0.0
        %v459 = vand.u32 %v235, 4294901760
        %v460 = vsub.f32 %v235, %v459
        %461 = vmatmul.mubr.f32.gmra.mxu0 %v460
        %v462 = vpop.f32.mrf.mxu0
        %v463 = vadd.f32 %v389, %v462
        %v464 = vpop.f32.mrf.mxu0
        %465 = vdwg.mxu0
        %466 = vmatprep.subr.mxu0 0.0
        %467 = vmatpush1.xpose.msra.mxu0 0.0
        %468 = vmatprep.subr.mxu0 0.0
        %469 = vmatpush1.xpose.msra.mxu0 0.0
        %470 = vmatprep.subr.mxu0 0.0
        %471 = vmatpush1.xpose.msra.mxu0 0.0
        %472 = vmatprep.subr.mxu0 0.0
        %473 = vmatpush1.xpose.msra.mxu0 0.0
        %474 = vmatprep.subr.mxu0 0.0
        %475 = vmatpush1.xpose.msra.mxu0 0.0
        %476 = vmatprep.subr.mxu0 0.0
        %477 = vmatpush1.xpose.msra.mxu0 0.0
        %478 = vmatprep.subr.mxu0 0.0
        %479 = vmatpush1.xpose.msra.mxu0 0.0
        %480 = vmatprep.subr.mxu0 0.0
        %481 = vmatpush1.xpose.msra.mxu0 0.0
        %482 = vmatprep.subr.mxu0 0.0
        %483 = vmatpush1.xpose.msra.mxu0 0.0
        %484 = vmatprep.subr.mxu0 0.0
        %485 = vmatpush1.xpose.msra.mxu0 0.0
        %486 = vmatprep.subr.mxu0 0.0
        %487 = vmatpush1.xpose.msra.mxu0 0.0
        %488 = vmatprep.subr.mxu0 0.0
        %489 = vmatpush1.xpose.msra.mxu0 0.0
        %490 = vmatprep.subr.mxu0 0.0
        %491 = vmatpush1.xpose.msra.mxu0 0.0
        %492 = vmatprep.subr.mxu0 0.0
        %493 = vmatpush1.xpose.msra.mxu0 0.0
        %494 = vmatprep.subr.mxu0 0.0
        %495 = vmatpush1.xpose.msra.mxu0 0.0
        %496 = vmatprep.subr.mxu0 0.0
        %v497 = vand.u32 %v238, 4294901760
        %498 = vmatpush1.xpose.msra.mxu0 %v497
        %499 = vmatprep.subr.mxu0 0.0
        %500 = vmatpush2.xpose.msra.mxu0 0.0
        %501 = vmatprep.subr.mxu0 0.0
        %502 = vmatpush2.xpose.msra.mxu0 0.0
        %503 = vmatprep.subr.mxu0 0.0
        %504 = vmatpush2.xpose.msra.mxu0 0.0
        %505 = vmatprep.subr.mxu0 0.0
        %506 = vmatpush2.xpose.msra.mxu0 0.0
        %507 = vmatprep.subr.mxu0 0.0
        %508 = vmatpush2.xpose.msra.mxu0 0.0
        %509 = vmatprep.subr.mxu0 0.0
        %510 = vmatpush2.xpose.msra.mxu0 0.0
        %511 = vmatprep.subr.mxu0 0.0
        %512 = vmatpush2.xpose.msra.mxu0 0.0
        %513 = vmatprep.subr.mxu0 0.0
        %514 = vmatpush2.xpose.msra.mxu0 0.0
        %515 = vmatprep.subr.mxu0 0.0
        %516 = vmatpush2.xpose.msra.mxu0 0.0
        %517 = vmatprep.subr.mxu0 0.0
        %518 = vmatpush2.xpose.msra.mxu0 0.0
        %519 = vmatprep.subr.mxu0 0.0
        %520 = vmatpush2.xpose.msra.mxu0 0.0
        %521 = vmatprep.subr.mxu0 0.0
        %522 = vmatpush2.xpose.msra.mxu0 0.0
        %523 = vmatprep.subr.mxu0 0.0
        %524 = vmatpush2.xpose.msra.mxu0 0.0
        %525 = vmatprep.subr.mxu0 0.0
        %526 = vmatpush2.xpose.msra.mxu0 0.0
        %527 = vmatprep.subr.mxu0 0.0
        %528 = vmatpush2.xpose.msra.mxu0 0.0
        %529 = vmatprep.subr.mxu0 0.0
        %530 = vmatpush2.xpose.msra.mxu0 0.0
        %531 = vmatprep.mubr.f32.mxu0 0.0
        %v532 = vand.u32 %v235, 4294901760
        %v533 = vsub.f32 %v235, %v532
        %v534 = vand.u32 %v533, 4294901760
        %535 = vmatmul.mubr.f32.gmra.mxu0 %v534
        %v536 = vpop.f32.mrf.mxu0
        %v537 = vadd.f32 %v463, %v536
        %v538 = vpop.f32.mrf.mxu0
        %539 = vdwg.mxu0
        %540 = vmatprep.subr.mxu0 0.0
        %541 = vmatpush1.xpose.msra.mxu0 0.0
        %542 = vmatprep.subr.mxu0 0.0
        %543 = vmatpush1.xpose.msra.mxu0 0.0
        %544 = vmatprep.subr.mxu0 0.0
        %545 = vmatpush1.xpose.msra.mxu0 0.0
        %546 = vmatprep.subr.mxu0 0.0
        %547 = vmatpush1.xpose.msra.mxu0 0.0
        %548 = vmatprep.subr.mxu0 0.0
        %549 = vmatpush1.xpose.msra.mxu0 0.0
        %550 = vmatprep.subr.mxu0 0.0
        %551 = vmatpush1.xpose.msra.mxu0 0.0
        %552 = vmatprep.subr.mxu0 0.0
        %553 = vmatpush1.xpose.msra.mxu0 0.0
        %554 = vmatprep.subr.mxu0 0.0
        %555 = vmatpush1.xpose.msra.mxu0 0.0
        %556 = vmatprep.subr.mxu0 0.0
        %557 = vmatpush1.xpose.msra.mxu0 0.0
        %558 = vmatprep.subr.mxu0 0.0
        %559 = vmatpush1.xpose.msra.mxu0 0.0
        %560 = vmatprep.subr.mxu0 0.0
        %561 = vmatpush1.xpose.msra.mxu0 0.0
        %562 = vmatprep.subr.mxu0 0.0
        %563 = vmatpush1.xpose.msra.mxu0 0.0
        %564 = vmatprep.subr.mxu0 0.0
        %565 = vmatpush1.xpose.msra.mxu0 0.0
        %566 = vmatprep.subr.mxu0 0.0
        %567 = vmatpush1.xpose.msra.mxu0 0.0
        %568 = vmatprep.subr.mxu0 0.0
        %569 = vmatpush1.xpose.msra.mxu0 0.0
        %570 = vmatprep.subr.mxu0 0.0
        %v571 = vand.u32 %v238, 4294901760
        %v572 = vsub.f32 %v238, %v571
        %v573 = vand.u32 %v572, 4294901760
        %574 = vmatpush1.xpose.msra.mxu0 %v573
        %575 = vmatprep.subr.mxu0 0.0
        %576 = vmatpush2.xpose.msra.mxu0 0.0
        %577 = vmatprep.subr.mxu0 0.0
        %578 = vmatpush2.xpose.msra.mxu0 0.0
        %579 = vmatprep.subr.mxu0 0.0
        %580 = vmatpush2.xpose.msra.mxu0 0.0
        %581 = vmatprep.subr.mxu0 0.0
        %582 = vmatpush2.xpose.msra.mxu0 0.0
        %583 = vmatprep.subr.mxu0 0.0
        %584 = vmatpush2.xpose.msra.mxu0 0.0
        %585 = vmatprep.subr.mxu0 0.0
        %586 = vmatpush2.xpose.msra.mxu0 0.0
        %587 = vmatprep.subr.mxu0 0.0
        %588 = vmatpush2.xpose.msra.mxu0 0.0
        %589 = vmatprep.subr.mxu0 0.0
        %590 = vmatpush2.xpose.msra.mxu0 0.0
        %591 = vmatprep.subr.mxu0 0.0
        %592 = vmatpush2.xpose.msra.mxu0 0.0
        %593 = vmatprep.subr.mxu0 0.0
        %594 = vmatpush2.xpose.msra.mxu0 0.0
        %595 = vmatprep.subr.mxu0 0.0
        %596 = vmatpush2.xpose.msra.mxu0 0.0
        %597 = vmatprep.subr.mxu0 0.0
        %598 = vmatpush2.xpose.msra.mxu0 0.0
        %599 = vmatprep.subr.mxu0 0.0
        %600 = vmatpush2.xpose.msra.mxu0 0.0
        %601 = vmatprep.subr.mxu0 0.0
        %602 = vmatpush2.xpose.msra.mxu0 0.0
        %603 = vmatprep.subr.mxu0 0.0
        %604 = vmatpush2.xpose.msra.mxu0 0.0
        %605 = vmatprep.subr.mxu0 0.0
        %606 = vmatpush2.xpose.msra.mxu0 0.0
        %607 = vmatprep.mubr.f32.mxu0 0.0
        %v608 = vand.u32 %v235, 4294901760
        %609 = vmatmul.mubr.f32.gmra.mxu0 %v608
        %v610 = vpop.f32.mrf.mxu0
        %v611 = vadd.f32 %v537, %v610
        %v612 = vpop.f32.mrf.mxu0
        %613 = vdwg.mxu0
        %614 = vmatprep.subr.mxu0 0.0
        %615 = vmatpush1.xpose.msra.mxu0 0.0
        %616 = vmatprep.subr.mxu0 0.0
        %617 = vmatpush1.xpose.msra.mxu0 0.0
        %618 = vmatprep.subr.mxu0 0.0
        %619 = vmatpush1.xpose.msra.mxu0 0.0
        %620 = vmatprep.subr.mxu0 0.0
        %621 = vmatpush1.xpose.msra.mxu0 0.0
        %622 = vmatprep.subr.mxu0 0.0
        %623 = vmatpush1.xpose.msra.mxu0 0.0
        %624 = vmatprep.subr.mxu0 0.0
        %625 = vmatpush1.xpose.msra.mxu0 0.0
        %626 = vmatprep.subr.mxu0 0.0
        %627 = vmatpush1.xpose.msra.mxu0 0.0
        %628 = vmatprep.subr.mxu0 0.0
        %629 = vmatpush1.xpose.msra.mxu0 0.0
        %630 = vmatprep.subr.mxu0 0.0
        %631 = vmatpush1.xpose.msra.mxu0 0.0
        %632 = vmatprep.subr.mxu0 0.0
        %633 = vmatpush1.xpose.msra.mxu0 0.0
        %634 = vmatprep.subr.mxu0 0.0
        %635 = vmatpush1.xpose.msra.mxu0 0.0
        %636 = vmatprep.subr.mxu0 0.0
        %637 = vmatpush1.xpose.msra.mxu0 0.0
        %638 = vmatprep.subr.mxu0 0.0
        %639 = vmatpush1.xpose.msra.mxu0 0.0
        %640 = vmatprep.subr.mxu0 0.0
        %641 = vmatpush1.xpose.msra.mxu0 0.0
        %642 = vmatprep.subr.mxu0 0.0
        %643 = vmatpush1.xpose.msra.mxu0 0.0
        %644 = vmatprep.subr.mxu0 0.0
        %v645 = vand.u32 %v238, 4294901760
        %646 = vmatpush1.xpose.msra.mxu0 %v645
        %647 = vmatprep.subr.mxu0 0.0
        %648 = vmatpush2.xpose.msra.mxu0 0.0
        %649 = vmatprep.subr.mxu0 0.0
        %650 = vmatpush2.xpose.msra.mxu0 0.0
        %651 = vmatprep.subr.mxu0 0.0
        %652 = vmatpush2.xpose.msra.mxu0 0.0
        %653 = vmatprep.subr.mxu0 0.0
        %654 = vmatpush2.xpose.msra.mxu0 0.0
        %655 = vmatprep.subr.mxu0 0.0
        %656 = vmatpush2.xpose.msra.mxu0 0.0
        %657 = vmatprep.subr.mxu0 0.0
        %658 = vmatpush2.xpose.msra.mxu0 0.0
        %659 = vmatprep.subr.mxu0 0.0
        %660 = vmatpush2.xpose.msra.mxu0 0.0
        %661 = vmatprep.subr.mxu0 0.0
        %662 = vmatpush2.xpose.msra.mxu0 0.0
        %663 = vmatprep.subr.mxu0 0.0
        %664 = vmatpush2.xpose.msra.mxu0 0.0
        %665 = vmatprep.subr.mxu0 0.0
        %666 = vmatpush2.xpose.msra.mxu0 0.0
        %667 = vmatprep.subr.mxu0 0.0
        %668 = vmatpush2.xpose.msra.mxu0 0.0
        %669 = vmatprep.subr.mxu0 0.0
        %670 = vmatpush2.xpose.msra.mxu0 0.0
        %671 = vmatprep.subr.mxu0 0.0
        %672 = vmatpush2.xpose.msra.mxu0 0.0
        %673 = vmatprep.subr.mxu0 0.0
        %674 = vmatpush2.xpose.msra.mxu0 0.0
        %675 = vmatprep.subr.mxu0 0.0
        %676 = vmatpush2.xpose.msra.mxu0 0.0
        %677 = vmatprep.subr.mxu0 0.0
        %678 = vmatpush2.xpose.msra.mxu0 0.0
        %679 = vmatprep.mubr.f32.mxu0 0.0
        %v680 = vand.u32 %v235, 4294901760
        %681 = vmatmul.mubr.f32.gmra.mxu0 %v680
        %v682 = vpop.f32.mrf.mxu0
        %v683 = vadd.f32 %v611, %v682
        %v684 = vpop.f32.mrf.mxu0
        %685 = vdwg.mxu0
        %v686 = vsel %vm233, %v225, 0.0
        %v688 = vsel %vm221, %v686, 0
        %690 = vmatprep.subr.mxu0 0.0
        %691 = vmatpush1.xpose.msra.mxu0 0.0
        %692 = vmatprep.subr.mxu0 0.0
        %693 = vmatpush1.xpose.msra.mxu0 0.0
        %694 = vmatprep.subr.mxu0 0.0
        %695 = vmatpush1.xpose.msra.mxu0 0.0
        %696 = vmatprep.subr.mxu0 0.0
        %697 = vmatpush1.xpose.msra.mxu0 0.0
        %698 = vmatprep.subr.mxu0 0.0
        %699 = vmatpush1.xpose.msra.mxu0 0.0
        %700 = vmatprep.subr.mxu0 0.0
        %701 = vmatpush1.xpose.msra.mxu0 0.0
        %702 = vmatprep.subr.mxu0 0.0
        %703 = vmatpush1.xpose.msra.mxu0 0.0
        %704 = vmatprep.subr.mxu0 0.0
        %705 = vmatpush1.xpose.msra.mxu0 0.0
        %706 = vmatprep.subr.mxu0 0.0
        %707 = vmatpush1.xpose.msra.mxu0 0.0
        %708 = vmatprep.subr.mxu0 0.0
        %709 = vmatpush1.xpose.msra.mxu0 0.0
        %710 = vmatprep.subr.mxu0 0.0
        %711 = vmatpush1.xpose.msra.mxu0 0.0
        %712 = vmatprep.subr.mxu0 0.0
        %713 = vmatpush1.xpose.msra.mxu0 0.0
        %714 = vmatprep.subr.mxu0 0.0
        %715 = vmatpush1.xpose.msra.mxu0 0.0
        %716 = vmatprep.subr.mxu0 0.0
        %717 = vmatpush1.xpose.msra.mxu0 0.0
        %718 = vmatprep.subr.mxu0 0.0
        %719 = vmatpush1.xpose.msra.mxu0 0.0
        %720 = vmatprep.subr.mxu0 0.0
        %v721 = vand.u32 %v688, 4294901760
        %722 = vmatpush1.xpose.msra.mxu0 %v721
        %723 = vmatprep.subr.mxu0 0.0
        %724 = vmatpush2.xpose.msra.mxu0 0.0
        %725 = vmatprep.subr.mxu0 0.0
        %726 = vmatpush2.xpose.msra.mxu0 0.0
        %727 = vmatprep.subr.mxu0 0.0
        %728 = vmatpush2.xpose.msra.mxu0 0.0
        %729 = vmatprep.subr.mxu0 0.0
        %730 = vmatpush2.xpose.msra.mxu0 0.0
        %731 = vmatprep.subr.mxu0 0.0
        %732 = vmatpush2.xpose.msra.mxu0 0.0
        %733 = vmatprep.subr.mxu0 0.0
        %734 = vmatpush2.xpose.msra.mxu0 0.0
        %735 = vmatprep.subr.mxu0 0.0
        %736 = vmatpush2.xpose.msra.mxu0 0.0
        %737 = vmatprep.subr.mxu0 0.0
        %738 = vmatpush2.xpose.msra.mxu0 0.0
        %739 = vmatprep.subr.mxu0 0.0
        %740 = vmatpush2.xpose.msra.mxu0 0.0
        %741 = vmatprep.subr.mxu0 0.0
        %742 = vmatpush2.xpose.msra.mxu0 0.0
        %743 = vmatprep.subr.mxu0 0.0
        %744 = vmatpush2.xpose.msra.mxu0 0.0
        %745 = vmatprep.subr.mxu0 0.0
        %746 = vmatpush2.xpose.msra.mxu0 0.0
        %747 = vmatprep.subr.mxu0 0.0
        %748 = vmatpush2.xpose.msra.mxu0 0.0
        %749 = vmatprep.subr.mxu0 0.0
        %750 = vmatpush2.xpose.msra.mxu0 0.0
        %751 = vmatprep.subr.mxu0 0.0
        %752 = vmatpush2.xpose.msra.mxu0 0.0
        %753 = vmatprep.subr.mxu0 0.0
        %754 = vmatpush2.xpose.msra.mxu0 0.0
        %755 = vmatprep.mubr.f32.mxu0 0.0
        %v756 = vand.u32 %v235, 4294901760
        %v757 = vsub.f32 %v235, %v756
        %v758 = vand.u32 %v757, 4294901760
        %v759 = vsub.f32 %v757, %v758
        %v760 = vand.u32 %v759, 4294901760
        %761 = vmatmul.mubr.f32.gmra.mxu0 %v760
        %v762 = vpop.f32.mrf.mxu0
        %v763 = vadd.f32 0.0, %v762
        %v764 = vpop.f32.mrf.mxu0
        %765 = vdwg.mxu0
        %766 = vmatprep.subr.mxu0 0.0
        %767 = vmatpush1.xpose.msra.mxu0 0.0
        %768 = vmatprep.subr.mxu0 0.0
        %769 = vmatpush1.xpose.msra.mxu0 0.0
        %770 = vmatprep.subr.mxu0 0.0
        %771 = vmatpush1.xpose.msra.mxu0 0.0
        %772 = vmatprep.subr.mxu0 0.0
        %773 = vmatpush1.xpose.msra.mxu0 0.0
        %774 = vmatprep.subr.mxu0 0.0
        %775 = vmatpush1.xpose.msra.mxu0 0.0
        %776 = vmatprep.subr.mxu0 0.0
        %777 = vmatpush1.xpose.msra.mxu0 0.0
        %778 = vmatprep.subr.mxu0 0.0
        %779 = vmatpush1.xpose.msra.mxu0 0.0
        %780 = vmatprep.subr.mxu0 0.0
        %781 = vmatpush1.xpose.msra.mxu0 0.0
        %782 = vmatprep.subr.mxu0 0.0
        %783 = vmatpush1.xpose.msra.mxu0 0.0
        %784 = vmatprep.subr.mxu0 0.0
        %785 = vmatpush1.xpose.msra.mxu0 0.0
        %786 = vmatprep.subr.mxu0 0.0
        %787 = vmatpush1.xpose.msra.mxu0 0.0
        %788 = vmatprep.subr.mxu0 0.0
        %789 = vmatpush1.xpose.msra.mxu0 0.0
        %790 = vmatprep.subr.mxu0 0.0
        %791 = vmatpush1.xpose.msra.mxu0 0.0
        %792 = vmatprep.subr.mxu0 0.0
        %793 = vmatpush1.xpose.msra.mxu0 0.0
        %794 = vmatprep.subr.mxu0 0.0
        %795 = vmatpush1.xpose.msra.mxu0 0.0
        %796 = vmatprep.subr.mxu0 0.0
        %v797 = vand.u32 %v688, 4294901760
        %v798 = vsub.f32 %v688, %v797
        %v799 = vand.u32 %v798, 4294901760
        %v800 = vsub.f32 %v798, %v799
        %v801 = vand.u32 %v800, 4294901760
        %802 = vmatpush1.xpose.msra.mxu0 %v801
        %803 = vmatprep.subr.mxu0 0.0
        %804 = vmatpush2.xpose.msra.mxu0 0.0
        %805 = vmatprep.subr.mxu0 0.0
        %806 = vmatpush2.xpose.msra.mxu0 0.0
        %807 = vmatprep.subr.mxu0 0.0
        %808 = vmatpush2.xpose.msra.mxu0 0.0
        %809 = vmatprep.subr.mxu0 0.0
        %810 = vmatpush2.xpose.msra.mxu0 0.0
        %811 = vmatprep.subr.mxu0 0.0
        %812 = vmatpush2.xpose.msra.mxu0 0.0
        %813 = vmatprep.subr.mxu0 0.0
        %814 = vmatpush2.xpose.msra.mxu0 0.0
        %815 = vmatprep.subr.mxu0 0.0
        %816 = vmatpush2.xpose.msra.mxu0 0.0
        %817 = vmatprep.subr.mxu0 0.0
        %818 = vmatpush2.xpose.msra.mxu0 0.0
        %819 = vmatprep.subr.mxu0 0.0
        %820 = vmatpush2.xpose.msra.mxu0 0.0
        %821 = vmatprep.subr.mxu0 0.0
        %822 = vmatpush2.xpose.msra.mxu0 0.0
        %823 = vmatprep.subr.mxu0 0.0
        %824 = vmatpush2.xpose.msra.mxu0 0.0
        %825 = vmatprep.subr.mxu0 0.0
        %826 = vmatpush2.xpose.msra.mxu0 0.0
        %827 = vmatprep.subr.mxu0 0.0
        %828 = vmatpush2.xpose.msra.mxu0 0.0
        %829 = vmatprep.subr.mxu0 0.0
        %830 = vmatpush2.xpose.msra.mxu0 0.0
        %831 = vmatprep.subr.mxu0 0.0
        %832 = vmatpush2.xpose.msra.mxu0 0.0
        %833 = vmatprep.subr.mxu0 0.0
        %834 = vmatpush2.xpose.msra.mxu0 0.0
        %835 = vmatprep.mubr.f32.mxu0 0.0
        %v836 = vand.u32 %v235, 4294901760
        %837 = vmatmul.mubr.f32.gmra.mxu0 %v836
        %v838 = vpop.f32.mrf.mxu0
        %v839 = vadd.f32 %v763, %v838
        %v840 = vpop.f32.mrf.mxu0
        %841 = vdwg.mxu0
        %842 = vmatprep.subr.mxu0 0.0
        %843 = vmatpush1.xpose.msra.mxu0 0.0
        %844 = vmatprep.subr.mxu0 0.0
        %845 = vmatpush1.xpose.msra.mxu0 0.0
        %846 = vmatprep.subr.mxu0 0.0
        %847 = vmatpush1.xpose.msra.mxu0 0.0
        %848 = vmatprep.subr.mxu0 0.0
        %849 = vmatpush1.xpose.msra.mxu0 0.0
        %850 = vmatprep.subr.mxu0 0.0
        %851 = vmatpush1.xpose.msra.mxu0 0.0
        %852 = vmatprep.subr.mxu0 0.0
        %853 = vmatpush1.xpose.msra.mxu0 0.0
        %854 = vmatprep.subr.mxu0 0.0
        %855 = vmatpush1.xpose.msra.mxu0 0.0
        %856 = vmatprep.subr.mxu0 0.0
        %857 = vmatpush1.xpose.msra.mxu0 0.0
        %858 = vmatprep.subr.mxu0 0.0
        %859 = vmatpush1.xpose.msra.mxu0 0.0
        %860 = vmatprep.subr.mxu0 0.0
        %861 = vmatpush1.xpose.msra.mxu0 0.0
        %862 = vmatprep.subr.mxu0 0.0
        %863 = vmatpush1.xpose.msra.mxu0 0.0
        %864 = vmatprep.subr.mxu0 0.0
        %865 = vmatpush1.xpose.msra.mxu0 0.0
        %866 = vmatprep.subr.mxu0 0.0
        %867 = vmatpush1.xpose.msra.mxu0 0.0
        %868 = vmatprep.subr.mxu0 0.0
        %869 = vmatpush1.xpose.msra.mxu0 0.0
        %870 = vmatprep.subr.mxu0 0.0
        %871 = vmatpush1.xpose.msra.mxu0 0.0
        %872 = vmatprep.subr.mxu0 0.0
        %v873 = vand.u32 %v688, 4294901760
        %v874 = vsub.f32 %v688, %v873
        %875 = vmatpush1.xpose.msra.mxu0 %v874
        %876 = vmatprep.subr.mxu0 0.0
        %877 = vmatpush2.xpose.msra.mxu0 0.0
        %878 = vmatprep.subr.mxu0 0.0
        %879 = vmatpush2.xpose.msra.mxu0 0.0
        %880 = vmatprep.subr.mxu0 0.0
        %881 = vmatpush2.xpose.msra.mxu0 0.0
        %882 = vmatprep.subr.mxu0 0.0
        %883 = vmatpush2.xpose.msra.mxu0 0.0
        %884 = vmatprep.subr.mxu0 0.0
        %885 = vmatpush2.xpose.msra.mxu0 0.0
        %886 = vmatprep.subr.mxu0 0.0
        %887 = vmatpush2.xpose.msra.mxu0 0.0
        %888 = vmatprep.subr.mxu0 0.0
        %889 = vmatpush2.xpose.msra.mxu0 0.0
        %890 = vmatprep.subr.mxu0 0.0
        %891 = vmatpush2.xpose.msra.mxu0 0.0
        %892 = vmatprep.subr.mxu0 0.0
        %893 = vmatpush2.xpose.msra.mxu0 0.0
        %894 = vmatprep.subr.mxu0 0.0
        %895 = vmatpush2.xpose.msra.mxu0 0.0
        %896 = vmatprep.subr.mxu0 0.0
        %897 = vmatpush2.xpose.msra.mxu0 0.0
        %898 = vmatprep.subr.mxu0 0.0
        %899 = vmatpush2.xpose.msra.mxu0 0.0
        %900 = vmatprep.subr.mxu0 0.0
        %901 = vmatpush2.xpose.msra.mxu0 0.0
        %902 = vmatprep.subr.mxu0 0.0
        %903 = vmatpush2.xpose.msra.mxu0 0.0
        %904 = vmatprep.subr.mxu0 0.0
        %905 = vmatpush2.xpose.msra.mxu0 0.0
        %906 = vmatprep.subr.mxu0 0.0
        %907 = vmatpush2.xpose.msra.mxu0 0.0
        %908 = vmatprep.mubr.f32.mxu0 0.0
        %v909 = vand.u32 %v235, 4294901760
        %v910 = vsub.f32 %v235, %v909
        %911 = vmatmul.mubr.f32.gmra.mxu0 %v910
        %v912 = vpop.f32.mrf.mxu0
        %v913 = vadd.f32 %v839, %v912
        %v914 = vpop.f32.mrf.mxu0
        %915 = vdwg.mxu0
        %916 = vmatprep.subr.mxu0 0.0
        %917 = vmatpush1.xpose.msra.mxu0 0.0
        %918 = vmatprep.subr.mxu0 0.0
        %919 = vmatpush1.xpose.msra.mxu0 0.0
        %920 = vmatprep.subr.mxu0 0.0
        %921 = vmatpush1.xpose.msra.mxu0 0.0
        %922 = vmatprep.subr.mxu0 0.0
        %923 = vmatpush1.xpose.msra.mxu0 0.0
        %924 = vmatprep.subr.mxu0 0.0
        %925 = vmatpush1.xpose.msra.mxu0 0.0
        %926 = vmatprep.subr.mxu0 0.0
        %927 = vmatpush1.xpose.msra.mxu0 0.0
        %928 = vmatprep.subr.mxu0 0.0
        %929 = vmatpush1.xpose.msra.mxu0 0.0
        %930 = vmatprep.subr.mxu0 0.0
        %931 = vmatpush1.xpose.msra.mxu0 0.0
        %932 = vmatprep.subr.mxu0 0.0
        %933 = vmatpush1.xpose.msra.mxu0 0.0
        %934 = vmatprep.subr.mxu0 0.0
        %935 = vmatpush1.xpose.msra.mxu0 0.0
        %936 = vmatprep.subr.mxu0 0.0
        %937 = vmatpush1.xpose.msra.mxu0 0.0
        %938 = vmatprep.subr.mxu0 0.0
        %939 = vmatpush1.xpose.msra.mxu0 0.0
        %940 = vmatprep.subr.mxu0 0.0
        %941 = vmatpush1.xpose.msra.mxu0 0.0
        %942 = vmatprep.subr.mxu0 0.0
        %943 = vmatpush1.xpose.msra.mxu0 0.0
        %944 = vmatprep.subr.mxu0 0.0
        %945 = vmatpush1.xpose.msra.mxu0 0.0
        %946 = vmatprep.subr.mxu0 0.0
        %v947 = vand.u32 %v688, 4294901760
        %948 = vmatpush1.xpose.msra.mxu0 %v947
        %949 = vmatprep.subr.mxu0 0.0
        %950 = vmatpush2.xpose.msra.mxu0 0.0
        %951 = vmatprep.subr.mxu0 0.0
        %952 = vmatpush2.xpose.msra.mxu0 0.0
        %953 = vmatprep.subr.mxu0 0.0
        %954 = vmatpush2.xpose.msra.mxu0 0.0
        %955 = vmatprep.subr.mxu0 0.0
        %956 = vmatpush2.xpose.msra.mxu0 0.0
        %957 = vmatprep.subr.mxu0 0.0
        %958 = vmatpush2.xpose.msra.mxu0 0.0
        %959 = vmatprep.subr.mxu0 0.0
        %960 = vmatpush2.xpose.msra.mxu0 0.0
        %961 = vmatprep.subr.mxu0 0.0
        %962 = vmatpush2.xpose.msra.mxu0 0.0
        %963 = vmatprep.subr.mxu0 0.0
        %964 = vmatpush2.xpose.msra.mxu0 0.0
        %965 = vmatprep.subr.mxu0 0.0
        %966 = vmatpush2.xpose.msra.mxu0 0.0
        %967 = vmatprep.subr.mxu0 0.0
        %968 = vmatpush2.xpose.msra.mxu0 0.0
        %969 = vmatprep.subr.mxu0 0.0
        %970 = vmatpush2.xpose.msra.mxu0 0.0
        %971 = vmatprep.subr.mxu0 0.0
        %972 = vmatpush2.xpose.msra.mxu0 0.0
        %973 = vmatprep.subr.mxu0 0.0
        %974 = vmatpush2.xpose.msra.mxu0 0.0
        %975 = vmatprep.subr.mxu0 0.0
        %976 = vmatpush2.xpose.msra.mxu0 0.0
        %977 = vmatprep.subr.mxu0 0.0
        %978 = vmatpush2.xpose.msra.mxu0 0.0
        %979 = vmatprep.subr.mxu0 0.0
        %980 = vmatpush2.xpose.msra.mxu0 0.0
        %981 = vmatprep.mubr.f32.mxu0 0.0
        %v982 = vand.u32 %v235, 4294901760
        %v983 = vsub.f32 %v235, %v982
        %v984 = vand.u32 %v983, 4294901760
        %985 = vmatmul.mubr.f32.gmra.mxu0 %v984
        %v986 = vpop.f32.mrf.mxu0
        %v987 = vadd.f32 %v913, %v986
        %v988 = vpop.f32.mrf.mxu0
        %989 = vdwg.mxu0
        %990 = vmatprep.subr.mxu0 0.0
        %991 = vmatpush1.xpose.msra.mxu0 0.0
        %992 = vmatprep.subr.mxu0 0.0
        %993 = vmatpush1.xpose.msra.mxu0 0.0
        %994 = vmatprep.subr.mxu0 0.0
        %995 = vmatpush1.xpose.msra.mxu0 0.0
        %996 = vmatprep.subr.mxu0 0.0
        %997 = vmatpush1.xpose.msra.mxu0 0.0
        %998 = vmatprep.subr.mxu0 0.0
        %999 = vmatpush1.xpose.msra.mxu0 0.0
        %1000 = vmatprep.subr.mxu0 0.0
        %1001 = vmatpush1.xpose.msra.mxu0 0.0
        %1002 = vmatprep.subr.mxu0 0.0
        %1003 = vmatpush1.xpose.msra.mxu0 0.0
        %1004 = vmatprep.subr.mxu0 0.0
        %1005 = vmatpush1.xpose.msra.mxu0 0.0
        %1006 = vmatprep.subr.mxu0 0.0
        %1007 = vmatpush1.xpose.msra.mxu0 0.0
        %1008 = vmatprep.subr.mxu0 0.0
        %1009 = vmatpush1.xpose.msra.mxu0 0.0
        %1010 = vmatprep.subr.mxu0 0.0
        %1011 = vmatpush1.xpose.msra.mxu0 0.0
        %1012 = vmatprep.subr.mxu0 0.0
        %1013 = vmatpush1.xpose.msra.mxu0 0.0
        %1014 = vmatprep.subr.mxu0 0.0
        %1015 = vmatpush1.xpose.msra.mxu0 0.0
        %1016 = vmatprep.subr.mxu0 0.0
        %1017 = vmatpush1.xpose.msra.mxu0 0.0
        %1018 = vmatprep.subr.mxu0 0.0
        %1019 = vmatpush1.xpose.msra.mxu0 0.0
        %1020 = vmatprep.subr.mxu0 0.0
        %v1021 = vand.u32 %v688, 4294901760
        %v1022 = vsub.f32 %v688, %v1021
        %v1023 = vand.u32 %v1022, 4294901760
        %1024 = vmatpush1.xpose.msra.mxu0 %v1023
        %1025 = vmatprep.subr.mxu0 0.0
        %1026 = vmatpush2.xpose.msra.mxu0 0.0
        %1027 = vmatprep.subr.mxu0 0.0
        %1028 = vmatpush2.xpose.msra.mxu0 0.0
        %1029 = vmatprep.subr.mxu0 0.0
        %1030 = vmatpush2.xpose.msra.mxu0 0.0
        %1031 = vmatprep.subr.mxu0 0.0
        %1032 = vmatpush2.xpose.msra.mxu0 0.0
        %1033 = vmatprep.subr.mxu0 0.0
        %1034 = vmatpush2.xpose.msra.mxu0 0.0
        %1035 = vmatprep.subr.mxu0 0.0
        %1036 = vmatpush2.xpose.msra.mxu0 0.0
        %1037 = vmatprep.subr.mxu0 0.0
        %1038 = vmatpush2.xpose.msra.mxu0 0.0
        %1039 = vmatprep.subr.mxu0 0.0
        %1040 = vmatpush2.xpose.msra.mxu0 0.0
        %1041 = vmatprep.subr.mxu0 0.0
        %1042 = vmatpush2.xpose.msra.mxu0 0.0
        %1043 = vmatprep.subr.mxu0 0.0
        %1044 = vmatpush2.xpose.msra.mxu0 0.0
        %1045 = vmatprep.subr.mxu0 0.0
        %1046 = vmatpush2.xpose.msra.mxu0 0.0
        %1047 = vmatprep.subr.mxu0 0.0
        %1048 = vmatpush2.xpose.msra.mxu0 0.0
        %1049 = vmatprep.subr.mxu0 0.0
        %1050 = vmatpush2.xpose.msra.mxu0 0.0
        %1051 = vmatprep.subr.mxu0 0.0
        %1052 = vmatpush2.xpose.msra.mxu0 0.0
        %1053 = vmatprep.subr.mxu0 0.0
        %1054 = vmatpush2.xpose.msra.mxu0 0.0
        %1055 = vmatprep.subr.mxu0 0.0
        %1056 = vmatpush2.xpose.msra.mxu0 0.0
        %1057 = vmatprep.mubr.f32.mxu0 0.0
        %v1058 = vand.u32 %v235, 4294901760
        %1059 = vmatmul.mubr.f32.gmra.mxu0 %v1058
        %v1060 = vpop.f32.mrf.mxu0
        %v1061 = vadd.f32 %v987, %v1060
        %v1062 = vpop.f32.mrf.mxu0
        %1063 = vdwg.mxu0
        %1064 = vmatprep.subr.mxu0 0.0
        %1065 = vmatpush1.xpose.msra.mxu0 0.0
        %1066 = vmatprep.subr.mxu0 0.0
        %1067 = vmatpush1.xpose.msra.mxu0 0.0
        %1068 = vmatprep.subr.mxu0 0.0
        %1069 = vmatpush1.xpose.msra.mxu0 0.0
        %1070 = vmatprep.subr.mxu0 0.0
        %1071 = vmatpush1.xpose.msra.mxu0 0.0
        %1072 = vmatprep.subr.mxu0 0.0
        %1073 = vmatpush1.xpose.msra.mxu0 0.0
        %1074 = vmatprep.subr.mxu0 0.0
        %1075 = vmatpush1.xpose.msra.mxu0 0.0
        %1076 = vmatprep.subr.mxu0 0.0
        %1077 = vmatpush1.xpose.msra.mxu0 0.0
        %1078 = vmatprep.subr.mxu0 0.0
        %1079 = vmatpush1.xpose.msra.mxu0 0.0
        %1080 = vmatprep.subr.mxu0 0.0
        %1081 = vmatpush1.xpose.msra.mxu0 0.0
        %1082 = vmatprep.subr.mxu0 0.0
        %1083 = vmatpush1.xpose.msra.mxu0 0.0
        %1084 = vmatprep.subr.mxu0 0.0
        %1085 = vmatpush1.xpose.msra.mxu0 0.0
        %1086 = vmatprep.subr.mxu0 0.0
        %1087 = vmatpush1.xpose.msra.mxu0 0.0
        %1088 = vmatprep.subr.mxu0 0.0
        %1089 = vmatpush1.xpose.msra.mxu0 0.0
        %1090 = vmatprep.subr.mxu0 0.0
        %1091 = vmatpush1.xpose.msra.mxu0 0.0
        %1092 = vmatprep.subr.mxu0 0.0
        %1093 = vmatpush1.xpose.msra.mxu0 0.0
        %1094 = vmatprep.subr.mxu0 0.0
        %v1095 = vand.u32 %v688, 4294901760
        %1096 = vmatpush1.xpose.msra.mxu0 %v1095
        %1097 = vmatprep.subr.mxu0 0.0
        %1098 = vmatpush2.xpose.msra.mxu0 0.0
        %1099 = vmatprep.subr.mxu0 0.0
        %1100 = vmatpush2.xpose.msra.mxu0 0.0
        %1101 = vmatprep.subr.mxu0 0.0
        %1102 = vmatpush2.xpose.msra.mxu0 0.0
        %1103 = vmatprep.subr.mxu0 0.0
        %1104 = vmatpush2.xpose.msra.mxu0 0.0
        %1105 = vmatprep.subr.mxu0 0.0
        %1106 = vmatpush2.xpose.msra.mxu0 0.0
        %1107 = vmatprep.subr.mxu0 0.0
        %1108 = vmatpush2.xpose.msra.mxu0 0.0
        %1109 = vmatprep.subr.mxu0 0.0
        %1110 = vmatpush2.xpose.msra.mxu0 0.0
        %1111 = vmatprep.subr.mxu0 0.0
        %1112 = vmatpush2.xpose.msra.mxu0 0.0
        %1113 = vmatprep.subr.mxu0 0.0
        %1114 = vmatpush2.xpose.msra.mxu0 0.0
        %1115 = vmatprep.subr.mxu0 0.0
        %1116 = vmatpush2.xpose.msra.mxu0 0.0
        %1117 = vmatprep.subr.mxu0 0.0
        %1118 = vmatpush2.xpose.msra.mxu0 0.0
        %1119 = vmatprep.subr.mxu0 0.0
        %1120 = vmatpush2.xpose.msra.mxu0 0.0
        %1121 = vmatprep.subr.mxu0 0.0
        %1122 = vmatpush2.xpose.msra.mxu0 0.0
        %1123 = vmatprep.subr.mxu0 0.0
        %1124 = vmatpush2.xpose.msra.mxu0 0.0
        %1125 = vmatprep.subr.mxu0 0.0
        %1126 = vmatpush2.xpose.msra.mxu0 0.0
        %1127 = vmatprep.subr.mxu0 0.0
        %1128 = vmatpush2.xpose.msra.mxu0 0.0
        %1129 = vmatprep.mubr.f32.mxu0 0.0
        %v1130 = vand.u32 %v235, 4294901760
        %1131 = vmatmul.mubr.f32.gmra.mxu0 %v1130
        %v1132 = vpop.f32.mrf.mxu0
        %v1133 = vadd.f32 %v1061, %v1132
        %v1134 = vpop.f32.mrf.mxu0
        %1135 = vdwg.mxu0
        %v1136 = vlog2.pop %v683
        %v1137 = vmul.f32 %v1136, 0.6931472
        %v1138 = vld [vmem:[%s2] sm:$0x1]
        %v1139 = vsel %vm233, 1, 0
        %v1140 = vcvt.s32.f32 %v1139
        %v1142 = vsel %vm221, %v1138, 0
        %v1145 = vsel %vm221, %v1140, 0
        %1147 = vmatprep.subr.mxu0 0.0
        %1148 = vmatpush1.xpose.msra.mxu0 0.0
        %1149 = vmatprep.subr.mxu0 0.0
        %1150 = vmatpush1.xpose.msra.mxu0 0.0
        %1151 = vmatprep.subr.mxu0 0.0
        %1152 = vmatpush1.xpose.msra.mxu0 0.0
        %1153 = vmatprep.subr.mxu0 0.0
        %1154 = vmatpush1.xpose.msra.mxu0 0.0
        %1155 = vmatprep.subr.mxu0 0.0
        %1156 = vmatpush1.xpose.msra.mxu0 0.0
        %1157 = vmatprep.subr.mxu0 0.0
        %1158 = vmatpush1.xpose.msra.mxu0 0.0
        %1159 = vmatprep.subr.mxu0 0.0
        %1160 = vmatpush1.xpose.msra.mxu0 0.0
        %1161 = vmatprep.subr.mxu0 0.0
        %1162 = vmatpush1.xpose.msra.mxu0 0.0
        %1163 = vmatprep.subr.mxu0 0.0
        %1164 = vmatpush1.xpose.msra.mxu0 0.0
        %1165 = vmatprep.subr.mxu0 0.0
        %1166 = vmatpush1.xpose.msra.mxu0 0.0
        %1167 = vmatprep.subr.mxu0 0.0
        %1168 = vmatpush1.xpose.msra.mxu0 0.0
        %1169 = vmatprep.subr.mxu0 0.0
        %1170 = vmatpush1.xpose.msra.mxu0 0.0
        %1171 = vmatprep.subr.mxu0 0.0
        %1172 = vmatpush1.xpose.msra.mxu0 0.0
        %1173 = vmatprep.subr.mxu0 0.0
        %1174 = vmatpush1.xpose.msra.mxu0 0.0
        %1175 = vmatprep.subr.mxu0 0.0
        %1176 = vmatpush1.xpose.msra.mxu0 0.0
        %1177 = vmatprep.subr.mxu0 0.0
        %v1178 = vand.u32 %v1145, 4294901760
        %1179 = vmatpush1.xpose.msra.mxu0 %v1178
        %1180 = vmatprep.subr.mxu0 0.0
        %1181 = vmatpush2.xpose.msra.mxu0 0.0
        %1182 = vmatprep.subr.mxu0 0.0
        %1183 = vmatpush2.xpose.msra.mxu0 0.0
        %1184 = vmatprep.subr.mxu0 0.0
        %1185 = vmatpush2.xpose.msra.mxu0 0.0
        %1186 = vmatprep.subr.mxu0 0.0
        %1187 = vmatpush2.xpose.msra.mxu0 0.0
        %1188 = vmatprep.subr.mxu0 0.0
        %1189 = vmatpush2.xpose.msra.mxu0 0.0
        %1190 = vmatprep.subr.mxu0 0.0
        %1191 = vmatpush2.xpose.msra.mxu0 0.0
        %1192 = vmatprep.subr.mxu0 0.0
        %1193 = vmatpush2.xpose.msra.mxu0 0.0
        %1194 = vmatprep.subr.mxu0 0.0
        %1195 = vmatpush2.xpose.msra.mxu0 0.0
        %1196 = vmatprep.subr.mxu0 0.0
        %1197 = vmatpush2.xpose.msra.mxu0 0.0
        %1198 = vmatprep.subr.mxu0 0.0
        %1199 = vmatpush2.xpose.msra.mxu0 0.0
        %1200 = vmatprep.subr.mxu0 0.0
        %1201 = vmatpush2.xpose.msra.mxu0 0.0
        %1202 = vmatprep.subr.mxu0 0.0
        %1203 = vmatpush2.xpose.msra.mxu0 0.0
        %1204 = vmatprep.subr.mxu0 0.0
        %1205 = vmatpush2.xpose.msra.mxu0 0.0
        %1206 = vmatprep.subr.mxu0 0.0
        %1207 = vmatpush2.xpose.msra.mxu0 0.0
        %1208 = vmatprep.subr.mxu0 0.0
        %1209 = vmatpush2.xpose.msra.mxu0 0.0
        %1210 = vmatprep.subr.mxu0 0.0
        %1211 = vmatpush2.xpose.msra.mxu0 0.0
        %1212 = vmatprep.mubr.f32.mxu0 0.0
        %v1213 = vand.u32 %v1142, 4294901760
        %v1214 = vsub.f32 %v1142, %v1213
        %v1215 = vand.u32 %v1214, 4294901760
        %v1216 = vsub.f32 %v1214, %v1215
        %v1217 = vand.u32 %v1216, 4294901760
        %1218 = vmatmul.mubr.f32.gmra.mxu0 %v1217
        %v1219 = vpop.f32.mrf.mxu0
        %v1220 = vadd.f32 0.0, %v1219
        %v1221 = vpop.f32.mrf.mxu0
        %1222 = vdwg.mxu0
        %1223 = vmatprep.subr.mxu0 0.0
        %1224 = vmatpush1.xpose.msra.mxu0 0.0
        %1225 = vmatprep.subr.mxu0 0.0
        %1226 = vmatpush1.xpose.msra.mxu0 0.0
        %1227 = vmatprep.subr.mxu0 0.0
        %1228 = vmatpush1.xpose.msra.mxu0 0.0
        %1229 = vmatprep.subr.mxu0 0.0
        %1230 = vmatpush1.xpose.msra.mxu0 0.0
        %1231 = vmatprep.subr.mxu0 0.0
        %1232 = vmatpush1.xpose.msra.mxu0 0.0
        %1233 = vmatprep.subr.mxu0 0.0
        %1234 = vmatpush1.xpose.msra.mxu0 0.0
        %1235 = vmatprep.subr.mxu0 0.0
        %1236 = vmatpush1.xpose.msra.mxu0 0.0
        %1237 = vmatprep.subr.mxu0 0.0
        %1238 = vmatpush1.xpose.msra.mxu0 0.0
        %1239 = vmatprep.subr.mxu0 0.0
        %1240 = vmatpush1.xpose.msra.mxu0 0.0
        %1241 = vmatprep.subr.mxu0 0.0
        %1242 = vmatpush1.xpose.msra.mxu0 0.0
        %1243 = vmatprep.subr.mxu0 0.0
        %1244 = vmatpush1.xpose.msra.mxu0 0.0
        %1245 = vmatprep.subr.mxu0 0.0
        %1246 = vmatpush1.xpose.msra.mxu0 0.0
        %1247 = vmatprep.subr.mxu0 0.0
        %1248 = vmatpush1.xpose.msra.mxu0 0.0
        %1249 = vmatprep.subr.mxu0 0.0
        %1250 = vmatpush1.xpose.msra.mxu0 0.0
        %1251 = vmatprep.subr.mxu0 0.0
        %1252 = vmatpush1.xpose.msra.mxu0 0.0
        %1253 = vmatprep.subr.mxu0 0.0
        %v1254 = vand.u32 %v1145, 4294901760
        %v1255 = vsub.f32 %v1145, %v1254
        %v1256 = vand.u32 %v1255, 4294901760
        %v1257 = vsub.f32 %v1255, %v1256
        %v1258 = vand.u32 %v1257, 4294901760
        %1259 = vmatpush1.xpose.msra.mxu0 %v1258
        %1260 = vmatprep.subr.mxu0 0.0
        %1261 = vmatpush2.xpose.msra.mxu0 0.0
        %1262 = vmatprep.subr.mxu0 0.0
        %1263 = vmatpush2.xpose.msra.mxu0 0.0
        %1264 = vmatprep.subr.mxu0 0.0
        %1265 = vmatpush2.xpose.msra.mxu0 0.0
        %1266 = vmatprep.subr.mxu0 0.0
        %1267 = vmatpush2.xpose.msra.mxu0 0.0
        %1268 = vmatprep.subr.mxu0 0.0
        %1269 = vmatpush2.xpose.msra.mxu0 0.0
        %1270 = vmatprep.subr.mxu0 0.0
        %1271 = vmatpush2.xpose.msra.mxu0 0.0
        %1272 = vmatprep.subr.mxu0 0.0
        %1273 = vmatpush2.xpose.msra.mxu0 0.0
        %1274 = vmatprep.subr.mxu0 0.0
        %1275 = vmatpush2.xpose.msra.mxu0 0.0
        %1276 = vmatprep.subr.mxu0 0.0
        %1277 = vmatpush2.xpose.msra.mxu0 0.0
        %1278 = vmatprep.subr.mxu0 0.0
        %1279 = vmatpush2.xpose.msra.mxu0 0.0
        %1280 = vmatprep.subr.mxu0 0.0
        %1281 = vmatpush2.xpose.msra.mxu0 0.0
        %1282 = vmatprep.subr.mxu0 0.0
        %1283 = vmatpush2.xpose.msra.mxu0 0.0
        %1284 = vmatprep.subr.mxu0 0.0
        %1285 = vmatpush2.xpose.msra.mxu0 0.0
        %1286 = vmatprep.subr.mxu0 0.0
        %1287 = vmatpush2.xpose.msra.mxu0 0.0
        %1288 = vmatprep.subr.mxu0 0.0
        %1289 = vmatpush2.xpose.msra.mxu0 0.0
        %1290 = vmatprep.subr.mxu0 0.0
        %1291 = vmatpush2.xpose.msra.mxu0 0.0
        %1292 = vmatprep.mubr.f32.mxu0 0.0
        %v1293 = vand.u32 %v1142, 4294901760
        %1294 = vmatmul.mubr.f32.gmra.mxu0 %v1293
        %v1295 = vpop.f32.mrf.mxu0
        %v1296 = vadd.f32 %v1220, %v1295
        %v1297 = vpop.f32.mrf.mxu0
        %1298 = vdwg.mxu0
        %1299 = vmatprep.subr.mxu0 0.0
        %1300 = vmatpush1.xpose.msra.mxu0 0.0
        %1301 = vmatprep.subr.mxu0 0.0
        %1302 = vmatpush1.xpose.msra.mxu0 0.0
        %1303 = vmatprep.subr.mxu0 0.0
        %1304 = vmatpush1.xpose.msra.mxu0 0.0
        %1305 = vmatprep.subr.mxu0 0.0
        %1306 = vmatpush1.xpose.msra.mxu0 0.0
        %1307 = vmatprep.subr.mxu0 0.0
        %1308 = vmatpush1.xpose.msra.mxu0 0.0
        %1309 = vmatprep.subr.mxu0 0.0
        %1310 = vmatpush1.xpose.msra.mxu0 0.0
        %1311 = vmatprep.subr.mxu0 0.0
        %1312 = vmatpush1.xpose.msra.mxu0 0.0
        %1313 = vmatprep.subr.mxu0 0.0
        %1314 = vmatpush1.xpose.msra.mxu0 0.0
        %1315 = vmatprep.subr.mxu0 0.0
        %1316 = vmatpush1.xpose.msra.mxu0 0.0
        %1317 = vmatprep.subr.mxu0 0.0
        %1318 = vmatpush1.xpose.msra.mxu0 0.0
        %1319 = vmatprep.subr.mxu0 0.0
        %1320 = vmatpush1.xpose.msra.mxu0 0.0
        %1321 = vmatprep.subr.mxu0 0.0
        %1322 = vmatpush1.xpose.msra.mxu0 0.0
        %1323 = vmatprep.subr.mxu0 0.0
        %1324 = vmatpush1.xpose.msra.mxu0 0.0
        %1325 = vmatprep.subr.mxu0 0.0
        %1326 = vmatpush1.xpose.msra.mxu0 0.0
        %1327 = vmatprep.subr.mxu0 0.0
        %1328 = vmatpush1.xpose.msra.mxu0 0.0
        %1329 = vmatprep.subr.mxu0 0.0
        %v1330 = vand.u32 %v1145, 4294901760
        %v1331 = vsub.f32 %v1145, %v1330
        %1332 = vmatpush1.xpose.msra.mxu0 %v1331
        %1333 = vmatprep.subr.mxu0 0.0
        %1334 = vmatpush2.xpose.msra.mxu0 0.0
        %1335 = vmatprep.subr.mxu0 0.0
        %1336 = vmatpush2.xpose.msra.mxu0 0.0
        %1337 = vmatprep.subr.mxu0 0.0
        %1338 = vmatpush2.xpose.msra.mxu0 0.0
        %1339 = vmatprep.subr.mxu0 0.0
        %1340 = vmatpush2.xpose.msra.mxu0 0.0
        %1341 = vmatprep.subr.mxu0 0.0
        %1342 = vmatpush2.xpose.msra.mxu0 0.0
        %1343 = vmatprep.subr.mxu0 0.0
        %1344 = vmatpush2.xpose.msra.mxu0 0.0
        %1345 = vmatprep.subr.mxu0 0.0
        %1346 = vmatpush2.xpose.msra.mxu0 0.0
        %1347 = vmatprep.subr.mxu0 0.0
        %1348 = vmatpush2.xpose.msra.mxu0 0.0
        %1349 = vmatprep.subr.mxu0 0.0
        %1350 = vmatpush2.xpose.msra.mxu0 0.0
        %1351 = vmatprep.subr.mxu0 0.0
        %1352 = vmatpush2.xpose.msra.mxu0 0.0
        %1353 = vmatprep.subr.mxu0 0.0
        %1354 = vmatpush2.xpose.msra.mxu0 0.0
        %1355 = vmatprep.subr.mxu0 0.0
        %1356 = vmatpush2.xpose.msra.mxu0 0.0
        %1357 = vmatprep.subr.mxu0 0.0
        %1358 = vmatpush2.xpose.msra.mxu0 0.0
        %1359 = vmatprep.subr.mxu0 0.0
        %1360 = vmatpush2.xpose.msra.mxu0 0.0
        %1361 = vmatprep.subr.mxu0 0.0
        %1362 = vmatpush2.xpose.msra.mxu0 0.0
        %1363 = vmatprep.subr.mxu0 0.0
        %1364 = vmatpush2.xpose.msra.mxu0 0.0
        %1365 = vmatprep.mubr.f32.mxu0 0.0
        %v1366 = vand.u32 %v1142, 4294901760
        %v1367 = vsub.f32 %v1142, %v1366
        %1368 = vmatmul.mubr.f32.gmra.mxu0 %v1367
        %v1369 = vpop.f32.mrf.mxu0
        %v1370 = vadd.f32 %v1296, %v1369
        %v1371 = vpop.f32.mrf.mxu0
        %1372 = vdwg.mxu0
        %1373 = vmatprep.subr.mxu0 0.0
        %1374 = vmatpush1.xpose.msra.mxu0 0.0
        %1375 = vmatprep.subr.mxu0 0.0
        %1376 = vmatpush1.xpose.msra.mxu0 0.0
        %1377 = vmatprep.subr.mxu0 0.0
        %1378 = vmatpush1.xpose.msra.mxu0 0.0
        %1379 = vmatprep.subr.mxu0 0.0
        %1380 = vmatpush1.xpose.msra.mxu0 0.0
        %1381 = vmatprep.subr.mxu0 0.0
        %1382 = vmatpush1.xpose.msra.mxu0 0.0
        %1383 = vmatprep.subr.mxu0 0.0
        %1384 = vmatpush1.xpose.msra.mxu0 0.0
        %1385 = vmatprep.subr.mxu0 0.0
        %1386 = vmatpush1.xpose.msra.mxu0 0.0
        %1387 = vmatprep.subr.mxu0 0.0
        %1388 = vmatpush1.xpose.msra.mxu0 0.0
        %1389 = vmatprep.subr.mxu0 0.0
        %1390 = vmatpush1.xpose.msra.mxu0 0.0
        %1391 = vmatprep.subr.mxu0 0.0
        %1392 = vmatpush1.xpose.msra.mxu0 0.0
        %1393 = vmatprep.subr.mxu0 0.0
        %1394 = vmatpush1.xpose.msra.mxu0 0.0
        %1395 = vmatprep.subr.mxu0 0.0
        %1396 = vmatpush1.xpose.msra.mxu0 0.0
        %1397 = vmatprep.subr.mxu0 0.0
        %1398 = vmatpush1.xpose.msra.mxu0 0.0
        %1399 = vmatprep.subr.mxu0 0.0
        %1400 = vmatpush1.xpose.msra.mxu0 0.0
        %1401 = vmatprep.subr.mxu0 0.0
        %1402 = vmatpush1.xpose.msra.mxu0 0.0
        %1403 = vmatprep.subr.mxu0 0.0
        %v1404 = vand.u32 %v1145, 4294901760
        %1405 = vmatpush1.xpose.msra.mxu0 %v1404
        %1406 = vmatprep.subr.mxu0 0.0
        %1407 = vmatpush2.xpose.msra.mxu0 0.0
        %1408 = vmatprep.subr.mxu0 0.0
        %1409 = vmatpush2.xpose.msra.mxu0 0.0
        %1410 = vmatprep.subr.mxu0 0.0
        %1411 = vmatpush2.xpose.msra.mxu0 0.0
        %1412 = vmatprep.subr.mxu0 0.0
        %1413 = vmatpush2.xpose.msra.mxu0 0.0
        %1414 = vmatprep.subr.mxu0 0.0
        %1415 = vmatpush2.xpose.msra.mxu0 0.0
        %1416 = vmatprep.subr.mxu0 0.0
        %1417 = vmatpush2.xpose.msra.mxu0 0.0
        %1418 = vmatprep.subr.mxu0 0.0
        %1419 = vmatpush2.xpose.msra.mxu0 0.0
        %1420 = vmatprep.subr.mxu0 0.0
        %1421 = vmatpush2.xpose.msra.mxu0 0.0
        %1422 = vmatprep.subr.mxu0 0.0
        %1423 = vmatpush2.xpose.msra.mxu0 0.0
        %1424 = vmatprep.subr.mxu0 0.0
        %1425 = vmatpush2.xpose.msra.mxu0 0.0
        %1426 = vmatprep.subr.mxu0 0.0
        %1427 = vmatpush2.xpose.msra.mxu0 0.0
        %1428 = vmatprep.subr.mxu0 0.0
        %1429 = vmatpush2.xpose.msra.mxu0 0.0
        %1430 = vmatprep.subr.mxu0 0.0
        %1431 = vmatpush2.xpose.msra.mxu0 0.0
        %1432 = vmatprep.subr.mxu0 0.0
        %1433 = vmatpush2.xpose.msra.mxu0 0.0
        %1434 = vmatprep.subr.mxu0 0.0
        %1435 = vmatpush2.xpose.msra.mxu0 0.0
        %1436 = vmatprep.subr.mxu0 0.0
        %1437 = vmatpush2.xpose.msra.mxu0 0.0
        %1438 = vmatprep.mubr.f32.mxu0 0.0
        %v1439 = vand.u32 %v1142, 4294901760
        %v1440 = vsub.f32 %v1142, %v1439
        %v1441 = vand.u32 %v1440, 4294901760
        %1442 = vmatmul.mubr.f32.gmra.mxu0 %v1441
        %v1443 = vpop.f32.mrf.mxu0
        %v1444 = vadd.f32 %v1370, %v1443
        %v1445 = vpop.f32.mrf.mxu0
        %1446 = vdwg.mxu0
        %1447 = vmatprep.subr.mxu0 0.0
        %1448 = vmatpush1.xpose.msra.mxu0 0.0
        %1449 = vmatprep.subr.mxu0 0.0
        %1450 = vmatpush1.xpose.msra.mxu0 0.0
        %1451 = vmatprep.subr.mxu0 0.0
        %1452 = vmatpush1.xpose.msra.mxu0 0.0
        %1453 = vmatprep.subr.mxu0 0.0
        %1454 = vmatpush1.xpose.msra.mxu0 0.0
        %1455 = vmatprep.subr.mxu0 0.0
        %1456 = vmatpush1.xpose.msra.mxu0 0.0
        %1457 = vmatprep.subr.mxu0 0.0
        %1458 = vmatpush1.xpose.msra.mxu0 0.0
        %1459 = vmatprep.subr.mxu0 0.0
        %1460 = vmatpush1.xpose.msra.mxu0 0.0
        %1461 = vmatprep.subr.mxu0 0.0
        %1462 = vmatpush1.xpose.msra.mxu0 0.0
        %1463 = vmatprep.subr.mxu0 0.0
        %1464 = vmatpush1.xpose.msra.mxu0 0.0
        %1465 = vmatprep.subr.mxu0 0.0
        %1466 = vmatpush1.xpose.msra.mxu0 0.0
        %1467 = vmatprep.subr.mxu0 0.0
        %1468 = vmatpush1.xpose.msra.mxu0 0.0
        %1469 = vmatprep.subr.mxu0 0.0
        %1470 = vmatpush1.xpose.msra.mxu0 0.0
        %1471 = vmatprep.subr.mxu0 0.0
        %1472 = vmatpush1.xpose.msra.mxu0 0.0
        %1473 = vmatprep.subr.mxu0 0.0
        %1474 = vmatpush1.xpose.msra.mxu0 0.0
        %1475 = vmatprep.subr.mxu0 0.0
        %1476 = vmatpush1.xpose.msra.mxu0 0.0
        %1477 = vmatprep.subr.mxu0 0.0
        %v1478 = vand.u32 %v1145, 4294901760
        %v1479 = vsub.f32 %v1145, %v1478
        %v1480 = vand.u32 %v1479, 4294901760
        %1481 = vmatpush1.xpose.msra.mxu0 %v1480
        %1482 = vmatprep.subr.mxu0 0.0
        %1483 = vmatpush2.xpose.msra.mxu0 0.0
        %1484 = vmatprep.subr.mxu0 0.0
        %1485 = vmatpush2.xpose.msra.mxu0 0.0
        %1486 = vmatprep.subr.mxu0 0.0
        %1487 = vmatpush2.xpose.msra.mxu0 0.0
        %1488 = vmatprep.subr.mxu0 0.0
        %1489 = vmatpush2.xpose.msra.mxu0 0.0
        %1490 = vmatprep.subr.mxu0 0.0
        %1491 = vmatpush2.xpose.msra.mxu0 0.0
        %1492 = vmatprep.subr.mxu0 0.0
        %1493 = vmatpush2.xpose.msra.mxu0 0.0
        %1494 = vmatprep.subr.mxu0 0.0
        %1495 = vmatpush2.xpose.msra.mxu0 0.0
        %1496 = vmatprep.subr.mxu0 0.0
        %1497 = vmatpush2.xpose.msra.mxu0 0.0
        %1498 = vmatprep.subr.mxu0 0.0
        %1499 = vmatpush2.xpose.msra.mxu0 0.0
        %1500 = vmatprep.subr.mxu0 0.0
        %1501 = vmatpush2.xpose.msra.mxu0 0.0
        %1502 = vmatprep.subr.mxu0 0.0
        %1503 = vmatpush2.xpose.msra.mxu0 0.0
        %1504 = vmatprep.subr.mxu0 0.0
        %1505 = vmatpush2.xpose.msra.mxu0 0.0
        %1506 = vmatprep.subr.mxu0 0.0
        %1507 = vmatpush2.xpose.msra.mxu0 0.0
        %1508 = vmatprep.subr.mxu0 0.0
        %1509 = vmatpush2.xpose.msra.mxu0 0.0
        %1510 = vmatprep.subr.mxu0 0.0
        %1511 = vmatpush2.xpose.msra.mxu0 0.0
        %1512 = vmatprep.subr.mxu0 0.0
        %1513 = vmatpush2.xpose.msra.mxu0 0.0
        %1514 = vmatprep.mubr.f32.mxu0 0.0
        %v1515 = vand.u32 %v1142, 4294901760
        %1516 = vmatmul.mubr.f32.gmra.mxu0 %v1515
        %v1517 = vpop.f32.mrf.mxu0
        %v1518 = vadd.f32 %v1444, %v1517
        %v1519 = vpop.f32.mrf.mxu0
        %1520 = vdwg.mxu0
        %1521 = vmatprep.subr.mxu0 0.0
        %1522 = vmatpush1.xpose.msra.mxu0 0.0
        %1523 = vmatprep.subr.mxu0 0.0
        %1524 = vmatpush1.xpose.msra.mxu0 0.0
        %1525 = vmatprep.subr.mxu0 0.0
        %1526 = vmatpush1.xpose.msra.mxu0 0.0
        %1527 = vmatprep.subr.mxu0 0.0
        %1528 = vmatpush1.xpose.msra.mxu0 0.0
        %1529 = vmatprep.subr.mxu0 0.0
        %1530 = vmatpush1.xpose.msra.mxu0 0.0
        %1531 = vmatprep.subr.mxu0 0.0
        %1532 = vmatpush1.xpose.msra.mxu0 0.0
        %1533 = vmatprep.subr.mxu0 0.0
        %1534 = vmatpush1.xpose.msra.mxu0 0.0
        %1535 = vmatprep.subr.mxu0 0.0
        %1536 = vmatpush1.xpose.msra.mxu0 0.0
        %1537 = vmatprep.subr.mxu0 0.0
        %1538 = vmatpush1.xpose.msra.mxu0 0.0
        %1539 = vmatprep.subr.mxu0 0.0
        %1540 = vmatpush1.xpose.msra.mxu0 0.0
        %1541 = vmatprep.subr.mxu0 0.0
        %1542 = vmatpush1.xpose.msra.mxu0 0.0
        %1543 = vmatprep.subr.mxu0 0.0
        %1544 = vmatpush1.xpose.msra.mxu0 0.0
        %1545 = vmatprep.subr.mxu0 0.0
        %1546 = vmatpush1.xpose.msra.mxu0 0.0
        %1547 = vmatprep.subr.mxu0 0.0
        %1548 = vmatpush1.xpose.msra.mxu0 0.0
        %1549 = vmatprep.subr.mxu0 0.0
        %1550 = vmatpush1.xpose.msra.mxu0 0.0
        %1551 = vmatprep.subr.mxu0 0.0
        %v1552 = vand.u32 %v1145, 4294901760
        %1553 = vmatpush1.xpose.msra.mxu0 %v1552
        %1554 = vmatprep.subr.mxu0 0.0
        %1555 = vmatpush2.xpose.msra.mxu0 0.0
        %1556 = vmatprep.subr.mxu0 0.0
        %1557 = vmatpush2.xpose.msra.mxu0 0.0
        %1558 = vmatprep.subr.mxu0 0.0
        %1559 = vmatpush2.xpose.msra.mxu0 0.0
        %1560 = vmatprep.subr.mxu0 0.0
        %1561 = vmatpush2.xpose.msra.mxu0 0.0
        %1562 = vmatprep.subr.mxu0 0.0
        %1563 = vmatpush2.xpose.msra.mxu0 0.0
        %1564 = vmatprep.subr.mxu0 0.0
        %1565 = vmatpush2.xpose.msra.mxu0 0.0
        %1566 = vmatprep.subr.mxu0 0.0
        %1567 = vmatpush2.xpose.msra.mxu0 0.0
        %1568 = vmatprep.subr.mxu0 0.0
        %1569 = vmatpush2.xpose.msra.mxu0 0.0
        %1570 = vmatprep.subr.mxu0 0.0
        %1571 = vmatpush2.xpose.msra.mxu0 0.0
        %1572 = vmatprep.subr.mxu0 0.0
        %1573 = vmatpush2.xpose.msra.mxu0 0.0
        %1574 = vmatprep.subr.mxu0 0.0
        %1575 = vmatpush2.xpose.msra.mxu0 0.0
        %1576 = vmatprep.subr.mxu0 0.0
        %1577 = vmatpush2.xpose.msra.mxu0 0.0
        %1578 = vmatprep.subr.mxu0 0.0
        %1579 = vmatpush2.xpose.msra.mxu0 0.0
        %1580 = vmatprep.subr.mxu0 0.0
        %1581 = vmatpush2.xpose.msra.mxu0 0.0
        %1582 = vmatprep.subr.mxu0 0.0
        %1583 = vmatpush2.xpose.msra.mxu0 0.0
        %1584 = vmatprep.subr.mxu0 0.0
        %1585 = vmatpush2.xpose.msra.mxu0 0.0
        %1586 = vmatprep.mubr.f32.mxu0 0.0
        %v1587 = vand.u32 %v1142, 4294901760
        %1588 = vmatmul.mubr.f32.gmra.mxu0 %v1587
        %v1589 = vpop.f32.mrf.mxu0
        %v1590 = vadd.f32 %v1518, %v1589
        %v1591 = vpop.f32.mrf.mxu0
        %1592 = vdwg.mxu0
        %v1593 = vsub.f32 %v1137, %v1133
        %v1594 = vmul.f32 %v1590, %v1593
        %vm1595 = vcmask 73728
        %v1596 = vsel %vm1595, %v1138, 0.0
        %1597 = vadd.xlane.f32.xlu0 %v1596
        %v1598 = vpop.xlane.xlu0 %1597
        %v1599 = vrot.slane %v1598, 4
        %v1600 = vadd.f32 %v1598, %v1599
        %v1601 = vrot.slane %v1600, 2
        %v1602 = vadd.f32 %v1600, %v1601
        %v1603 = vrot.slane %v1602, 1
        %v1604 = vadd.f32 %v1602, %v1603
        %s1605 = vtos %v1604
        %v1607 = vsel %vm221, %v225, 0
        %1609 = vmatprep.subr.mxu0 0.0
        %1610 = vmatpush1.xpose.msra.mxu0 0.0
        %1611 = vmatprep.subr.mxu0 0.0
        %1612 = vmatpush1.xpose.msra.mxu0 0.0
        %1613 = vmatprep.subr.mxu0 0.0
        %1614 = vmatpush1.xpose.msra.mxu0 0.0
        %1615 = vmatprep.subr.mxu0 0.0
        %1616 = vmatpush1.xpose.msra.mxu0 0.0
        %1617 = vmatprep.subr.mxu0 0.0
        %1618 = vmatpush1.xpose.msra.mxu0 0.0
        %1619 = vmatprep.subr.mxu0 0.0
        %1620 = vmatpush1.xpose.msra.mxu0 0.0
        %1621 = vmatprep.subr.mxu0 0.0
        %1622 = vmatpush1.xpose.msra.mxu0 0.0
        %1623 = vmatprep.subr.mxu0 0.0
        %1624 = vmatpush1.xpose.msra.mxu0 0.0
        %1625 = vmatprep.subr.mxu0 0.0
        %1626 = vmatpush1.xpose.msra.mxu0 0.0
        %1627 = vmatprep.subr.mxu0 0.0
        %1628 = vmatpush1.xpose.msra.mxu0 0.0
        %1629 = vmatprep.subr.mxu0 0.0
        %1630 = vmatpush1.xpose.msra.mxu0 0.0
        %1631 = vmatprep.subr.mxu0 0.0
        %1632 = vmatpush1.xpose.msra.mxu0 0.0
        %1633 = vmatprep.subr.mxu0 0.0
        %1634 = vmatpush1.xpose.msra.mxu0 0.0
        %1635 = vmatprep.subr.mxu0 0.0
        %1636 = vmatpush1.xpose.msra.mxu0 0.0
        %1637 = vmatprep.subr.mxu0 0.0
        %1638 = vmatpush1.xpose.msra.mxu0 0.0
        %1639 = vmatprep.subr.mxu0 0.0
        %v1640 = vand.u32 %v1607, 4294901760
        %1641 = vmatpush1.xpose.msra.mxu0 %v1640
        %1642 = vmatprep.subr.mxu0 0.0
        %1643 = vmatpush2.xpose.msra.mxu0 0.0
        %1644 = vmatprep.subr.mxu0 0.0
        %1645 = vmatpush2.xpose.msra.mxu0 0.0
        %1646 = vmatprep.subr.mxu0 0.0
        %1647 = vmatpush2.xpose.msra.mxu0 0.0
        %1648 = vmatprep.subr.mxu0 0.0
        %1649 = vmatpush2.xpose.msra.mxu0 0.0
        %1650 = vmatprep.subr.mxu0 0.0
        %1651 = vmatpush2.xpose.msra.mxu0 0.0
        %1652 = vmatprep.subr.mxu0 0.0
        %1653 = vmatpush2.xpose.msra.mxu0 0.0
        %1654 = vmatprep.subr.mxu0 0.0
        %1655 = vmatpush2.xpose.msra.mxu0 0.0
        %1656 = vmatprep.subr.mxu0 0.0
        %1657 = vmatpush2.xpose.msra.mxu0 0.0
        %1658 = vmatprep.subr.mxu0 0.0
        %1659 = vmatpush2.xpose.msra.mxu0 0.0
        %1660 = vmatprep.subr.mxu0 0.0
        %1661 = vmatpush2.xpose.msra.mxu0 0.0
        %1662 = vmatprep.subr.mxu0 0.0
        %1663 = vmatpush2.xpose.msra.mxu0 0.0
        %1664 = vmatprep.subr.mxu0 0.0
        %1665 = vmatpush2.xpose.msra.mxu0 0.0
        %1666 = vmatprep.subr.mxu0 0.0
        %1667 = vmatpush2.xpose.msra.mxu0 0.0
        %1668 = vmatprep.subr.mxu0 0.0
        %1669 = vmatpush2.xpose.msra.mxu0 0.0
        %1670 = vmatprep.subr.mxu0 0.0
        %1671 = vmatpush2.xpose.msra.mxu0 0.0
        %1672 = vmatprep.subr.mxu0 0.0
        %1673 = vmatpush2.xpose.msra.mxu0 0.0
        %1674 = vmatprep.mubr.f32.mxu0 0.0
        %v1675 = vand.u32 %v1142, 4294901760
        %v1676 = vsub.f32 %v1142, %v1675
        %v1677 = vand.u32 %v1676, 4294901760
        %v1678 = vsub.f32 %v1676, %v1677
        %v1679 = vand.u32 %v1678, 4294901760
        %1680 = vmatmul.mubr.f32.gmra.mxu0 %v1679
        %v1681 = vpop.f32.mrf.mxu0
        %v1682 = vadd.f32 0.0, %v1681
        %v1683 = vpop.f32.mrf.mxu0
        %1684 = vdwg.mxu0
        %1685 = vmatprep.subr.mxu0 0.0
        %1686 = vmatpush1.xpose.msra.mxu0 0.0
        %1687 = vmatprep.subr.mxu0 0.0
        %1688 = vmatpush1.xpose.msra.mxu0 0.0
        %1689 = vmatprep.subr.mxu0 0.0
        %1690 = vmatpush1.xpose.msra.mxu0 0.0
        %1691 = vmatprep.subr.mxu0 0.0
        %1692 = vmatpush1.xpose.msra.mxu0 0.0
        %1693 = vmatprep.subr.mxu0 0.0
        %1694 = vmatpush1.xpose.msra.mxu0 0.0
        %1695 = vmatprep.subr.mxu0 0.0
        %1696 = vmatpush1.xpose.msra.mxu0 0.0
        %1697 = vmatprep.subr.mxu0 0.0
        %1698 = vmatpush1.xpose.msra.mxu0 0.0
        %1699 = vmatprep.subr.mxu0 0.0
        %1700 = vmatpush1.xpose.msra.mxu0 0.0
        %1701 = vmatprep.subr.mxu0 0.0
        %1702 = vmatpush1.xpose.msra.mxu0 0.0
        %1703 = vmatprep.subr.mxu0 0.0
        %1704 = vmatpush1.xpose.msra.mxu0 0.0
        %1705 = vmatprep.subr.mxu0 0.0
        %1706 = vmatpush1.xpose.msra.mxu0 0.0
        %1707 = vmatprep.subr.mxu0 0.0
        %1708 = vmatpush1.xpose.msra.mxu0 0.0
        %1709 = vmatprep.subr.mxu0 0.0
        %1710 = vmatpush1.xpose.msra.mxu0 0.0
        %1711 = vmatprep.subr.mxu0 0.0
        %1712 = vmatpush1.xpose.msra.mxu0 0.0
        %1713 = vmatprep.subr.mxu0 0.0
        %1714 = vmatpush1.xpose.msra.mxu0 0.0
        %1715 = vmatprep.subr.mxu0 0.0
        %v1716 = vand.u32 %v1607, 4294901760
        %v1717 = vsub.f32 %v1607, %v1716
        %v1718 = vand.u32 %v1717, 4294901760
        %v1719 = vsub.f32 %v1717, %v1718
        %v1720 = vand.u32 %v1719, 4294901760
        %1721 = vmatpush1.xpose.msra.mxu0 %v1720
        %1722 = vmatprep.subr.mxu0 0.0
        %1723 = vmatpush2.xpose.msra.mxu0 0.0
        %1724 = vmatprep.subr.mxu0 0.0
        %1725 = vmatpush2.xpose.msra.mxu0 0.0
        %1726 = vmatprep.subr.mxu0 0.0
        %1727 = vmatpush2.xpose.msra.mxu0 0.0
        %1728 = vmatprep.subr.mxu0 0.0
        %1729 = vmatpush2.xpose.msra.mxu0 0.0
        %1730 = vmatprep.subr.mxu0 0.0
        %1731 = vmatpush2.xpose.msra.mxu0 0.0
        %1732 = vmatprep.subr.mxu0 0.0
        %1733 = vmatpush2.xpose.msra.mxu0 0.0
        %1734 = vmatprep.subr.mxu0 0.0
        %1735 = vmatpush2.xpose.msra.mxu0 0.0
        %1736 = vmatprep.subr.mxu0 0.0
        %1737 = vmatpush2.xpose.msra.mxu0 0.0
        %1738 = vmatprep.subr.mxu0 0.0
        %1739 = vmatpush2.xpose.msra.mxu0 0.0
        %1740 = vmatprep.subr.mxu0 0.0
        %1741 = vmatpush2.xpose.msra.mxu0 0.0
        %1742 = vmatprep.subr.mxu0 0.0
        %1743 = vmatpush2.xpose.msra.mxu0 0.0
        %1744 = vmatprep.subr.mxu0 0.0
        %1745 = vmatpush2.xpose.msra.mxu0 0.0
        %1746 = vmatprep.subr.mxu0 0.0
        %1747 = vmatpush2.xpose.msra.mxu0 0.0
        %1748 = vmatprep.subr.mxu0 0.0
        %1749 = vmatpush2.xpose.msra.mxu0 0.0
        %1750 = vmatprep.subr.mxu0 0.0
        %1751 = vmatpush2.xpose.msra.mxu0 0.0
        %1752 = vmatprep.subr.mxu0 0.0
        %1753 = vmatpush2.xpose.msra.mxu0 0.0
        %1754 = vmatprep.mubr.f32.mxu0 0.0
        %v1755 = vand.u32 %v1142, 4294901760
        %1756 = vmatmul.mubr.f32.gmra.mxu0 %v1755
        %v1757 = vpop.f32.mrf.mxu0
        %v1758 = vadd.f32 %v1682, %v1757
        %v1759 = vpop.f32.mrf.mxu0
        %1760 = vdwg.mxu0
        %1761 = vmatprep.subr.mxu0 0.0
        %1762 = vmatpush1.xpose.msra.mxu0 0.0
        %1763 = vmatprep.subr.mxu0 0.0
        %1764 = vmatpush1.xpose.msra.mxu0 0.0
        %1765 = vmatprep.subr.mxu0 0.0
        %1766 = vmatpush1.xpose.msra.mxu0 0.0
        %1767 = vmatprep.subr.mxu0 0.0
        %1768 = vmatpush1.xpose.msra.mxu0 0.0
        %1769 = vmatprep.subr.mxu0 0.0
        %1770 = vmatpush1.xpose.msra.mxu0 0.0
        %1771 = vmatprep.subr.mxu0 0.0
        %1772 = vmatpush1.xpose.msra.mxu0 0.0
        %1773 = vmatprep.subr.mxu0 0.0
        %1774 = vmatpush1.xpose.msra.mxu0 0.0
        %1775 = vmatprep.subr.mxu0 0.0
        %1776 = vmatpush1.xpose.msra.mxu0 0.0
        %1777 = vmatprep.subr.mxu0 0.0
        %1778 = vmatpush1.xpose.msra.mxu0 0.0
        %1779 = vmatprep.subr.mxu0 0.0
        %1780 = vmatpush1.xpose.msra.mxu0 0.0
        %1781 = vmatprep.subr.mxu0 0.0
        %1782 = vmatpush1.xpose.msra.mxu0 0.0
        %1783 = vmatprep.subr.mxu0 0.0
        %1784 = vmatpush1.xpose.msra.mxu0 0.0
        %1785 = vmatprep.subr.mxu0 0.0
        %1786 = vmatpush1.xpose.msra.mxu0 0.0
        %1787 = vmatprep.subr.mxu0 0.0
        %1788 = vmatpush1.xpose.msra.mxu0 0.0
        %1789 = vmatprep.subr.mxu0 0.0
        %1790 = vmatpush1.xpose.msra.mxu0 0.0
        %1791 = vmatprep.subr.mxu0 0.0
        %v1792 = vand.u32 %v1607, 4294901760
        %v1793 = vsub.f32 %v1607, %v1792
        %1794 = vmatpush1.xpose.msra.mxu0 %v1793
        %1795 = vmatprep.subr.mxu0 0.0
        %1796 = vmatpush2.xpose.msra.mxu0 0.0
        %1797 = vmatprep.subr.mxu0 0.0
        %1798 = vmatpush2.xpose.msra.mxu0 0.0
        %1799 = vmatprep.subr.mxu0 0.0
        %1800 = vmatpush2.xpose.msra.mxu0 0.0
        %1801 = vmatprep.subr.mxu0 0.0
        %1802 = vmatpush2.xpose.msra.mxu0 0.0
        %1803 = vmatprep.subr.mxu0 0.0
        %1804 = vmatpush2.xpose.msra.mxu0 0.0
        %1805 = vmatprep.subr.mxu0 0.0
        %1806 = vmatpush2.xpose.msra.mxu0 0.0
        %1807 = vmatprep.subr.mxu0 0.0
        %1808 = vmatpush2.xpose.msra.mxu0 0.0
        %1809 = vmatprep.subr.mxu0 0.0
        %1810 = vmatpush2.xpose.msra.mxu0 0.0
        %1811 = vmatprep.subr.mxu0 0.0
        %1812 = vmatpush2.xpose.msra.mxu0 0.0
        %1813 = vmatprep.subr.mxu0 0.0
        %1814 = vmatpush2.xpose.msra.mxu0 0.0
        %1815 = vmatprep.subr.mxu0 0.0
        %1816 = vmatpush2.xpose.msra.mxu0 0.0
        %1817 = vmatprep.subr.mxu0 0.0
        %1818 = vmatpush2.xpose.msra.mxu0 0.0
        %1819 = vmatprep.subr.mxu0 0.0
        %1820 = vmatpush2.xpose.msra.mxu0 0.0
        %1821 = vmatprep.subr.mxu0 0.0
        %1822 = vmatpush2.xpose.msra.mxu0 0.0
        %1823 = vmatprep.subr.mxu0 0.0
        %1824 = vmatpush2.xpose.msra.mxu0 0.0
        %1825 = vmatprep.subr.mxu0 0.0
        %1826 = vmatpush2.xpose.msra.mxu0 0.0
        %1827 = vmatprep.mubr.f32.mxu0 0.0
        %v1828 = vand.u32 %v1142, 4294901760
        %v1829 = vsub.f32 %v1142, %v1828
        %1830 = vmatmul.mubr.f32.gmra.mxu0 %v1829
        %v1831 = vpop.f32.mrf.mxu0
        %v1832 = vadd.f32 %v1758, %v1831
        %v1833 = vpop.f32.mrf.mxu0
        %1834 = vdwg.mxu0
        %1835 = vmatprep.subr.mxu0 0.0
        %1836 = vmatpush1.xpose.msra.mxu0 0.0
        %1837 = vmatprep.subr.mxu0 0.0
        %1838 = vmatpush1.xpose.msra.mxu0 0.0
        %1839 = vmatprep.subr.mxu0 0.0
        %1840 = vmatpush1.xpose.msra.mxu0 0.0
        %1841 = vmatprep.subr.mxu0 0.0
        %1842 = vmatpush1.xpose.msra.mxu0 0.0
        %1843 = vmatprep.subr.mxu0 0.0
        %1844 = vmatpush1.xpose.msra.mxu0 0.0
        %1845 = vmatprep.subr.mxu0 0.0
        %1846 = vmatpush1.xpose.msra.mxu0 0.0
        %1847 = vmatprep.subr.mxu0 0.0
        %1848 = vmatpush1.xpose.msra.mxu0 0.0
        %1849 = vmatprep.subr.mxu0 0.0
        %1850 = vmatpush1.xpose.msra.mxu0 0.0
        %1851 = vmatprep.subr.mxu0 0.0
        %1852 = vmatpush1.xpose.msra.mxu0 0.0
        %1853 = vmatprep.subr.mxu0 0.0
        %1854 = vmatpush1.xpose.msra.mxu0 0.0
        %1855 = vmatprep.subr.mxu0 0.0
        %1856 = vmatpush1.xpose.msra.mxu0 0.0
        %1857 = vmatprep.subr.mxu0 0.0
        %1858 = vmatpush1.xpose.msra.mxu0 0.0
        %1859 = vmatprep.subr.mxu0 0.0
        %1860 = vmatpush1.xpose.msra.mxu0 0.0
        %1861 = vmatprep.subr.mxu0 0.0
        %1862 = vmatpush1.xpose.msra.mxu0 0.0
        %1863 = vmatprep.subr.mxu0 0.0
        %1864 = vmatpush1.xpose.msra.mxu0 0.0
        %1865 = vmatprep.subr.mxu0 0.0
        %v1866 = vand.u32 %v1607, 4294901760
        %1867 = vmatpush1.xpose.msra.mxu0 %v1866
        %1868 = vmatprep.subr.mxu0 0.0
        %1869 = vmatpush2.xpose.msra.mxu0 0.0
        %1870 = vmatprep.subr.mxu0 0.0
        %1871 = vmatpush2.xpose.msra.mxu0 0.0
        %1872 = vmatprep.subr.mxu0 0.0
        %1873 = vmatpush2.xpose.msra.mxu0 0.0
        %1874 = vmatprep.subr.mxu0 0.0
        %1875 = vmatpush2.xpose.msra.mxu0 0.0
        %1876 = vmatprep.subr.mxu0 0.0
        %1877 = vmatpush2.xpose.msra.mxu0 0.0
        %1878 = vmatprep.subr.mxu0 0.0
        %1879 = vmatpush2.xpose.msra.mxu0 0.0
        %1880 = vmatprep.subr.mxu0 0.0
        %1881 = vmatpush2.xpose.msra.mxu0 0.0
        %1882 = vmatprep.subr.mxu0 0.0
        %1883 = vmatpush2.xpose.msra.mxu0 0.0
        %1884 = vmatprep.subr.mxu0 0.0
        %1885 = vmatpush2.xpose.msra.mxu0 0.0
        %1886 = vmatprep.subr.mxu0 0.0
        %1887 = vmatpush2.xpose.msra.mxu0 0.0
        %1888 = vmatprep.subr.mxu0 0.0
        %1889 = vmatpush2.xpose.msra.mxu0 0.0
        %1890 = vmatprep.subr.mxu0 0.0
        %1891 = vmatpush2.xpose.msra.mxu0 0.0
        %1892 = vmatprep.subr.mxu0 0.0
        %1893 = vmatpush2.xpose.msra.mxu0 0.0
        %1894 = vmatprep.subr.mxu0 0.0
        %1895 = vmatpush2.xpose.msra.mxu0 0.0
        %1896 = vmatprep.subr.mxu0 0.0
        %1897 = vmatpush2.xpose.msra.mxu0 0.0
        %1898 = vmatprep.subr.mxu0 0.0
        %1899 = vmatpush2.xpose.msra.mxu0 0.0
        %1900 = vmatprep.mubr.f32.mxu0 0.0
        %v1901 = vand.u32 %v1142, 4294901760
        %v1902 = vsub.f32 %v1142, %v1901
        %v1903 = vand.u32 %v1902, 4294901760
        %1904 = vmatmul.mubr.f32.gmra.mxu0 %v1903
        %v1905 = vpop.f32.mrf.mxu0
        %v1906 = vadd.f32 %v1832, %v1905
        %v1907 = vpop.f32.mrf.mxu0
        %1908 = vdwg.mxu0
        %1909 = vmatprep.subr.mxu0 0.0
        %1910 = vmatpush1.xpose.msra.mxu0 0.0
        %1911 = vmatprep.subr.mxu0 0.0
        %1912 = vmatpush1.xpose.msra.mxu0 0.0
        %1913 = vmatprep.subr.mxu0 0.0
        %1914 = vmatpush1.xpose.msra.mxu0 0.0
        %1915 = vmatprep.subr.mxu0 0.0
        %1916 = vmatpush1.xpose.msra.mxu0 0.0
        %1917 = vmatprep.subr.mxu0 0.0
        %1918 = vmatpush1.xpose.msra.mxu0 0.0
        %1919 = vmatprep.subr.mxu0 0.0
        %1920 = vmatpush1.xpose.msra.mxu0 0.0
        %1921 = vmatprep.subr.mxu0 0.0
        %1922 = vmatpush1.xpose.msra.mxu0 0.0
        %1923 = vmatprep.subr.mxu0 0.0
        %1924 = vmatpush1.xpose.msra.mxu0 0.0
        %1925 = vmatprep.subr.mxu0 0.0
        %1926 = vmatpush1.xpose.msra.mxu0 0.0
        %1927 = vmatprep.subr.mxu0 0.0
        %1928 = vmatpush1.xpose.msra.mxu0 0.0
        %1929 = vmatprep.subr.mxu0 0.0
        %1930 = vmatpush1.xpose.msra.mxu0 0.0
        %1931 = vmatprep.subr.mxu0 0.0
        %1932 = vmatpush1.xpose.msra.mxu0 0.0
        %1933 = vmatprep.subr.mxu0 0.0
        %1934 = vmatpush1.xpose.msra.mxu0 0.0
        %1935 = vmatprep.subr.mxu0 0.0
        %1936 = vmatpush1.xpose.msra.mxu0 0.0
        %1937 = vmatprep.subr.mxu0 0.0
        %1938 = vmatpush1.xpose.msra.mxu0 0.0
        %1939 = vmatprep.subr.mxu0 0.0
        %v1940 = vand.u32 %v1607, 4294901760
        %v1941 = vsub.f32 %v1607, %v1940
        %v1942 = vand.u32 %v1941, 4294901760
        %1943 = vmatpush1.xpose.msra.mxu0 %v1942
        %1944 = vmatprep.subr.mxu0 0.0
        %1945 = vmatpush2.xpose.msra.mxu0 0.0
        %1946 = vmatprep.subr.mxu0 0.0
        %1947 = vmatpush2.xpose.msra.mxu0 0.0
        %1948 = vmatprep.subr.mxu0 0.0
        %1949 = vmatpush2.xpose.msra.mxu0 0.0
        %1950 = vmatprep.subr.mxu0 0.0
        %1951 = vmatpush2.xpose.msra.mxu0 0.0
        %1952 = vmatprep.subr.mxu0 0.0
        %1953 = vmatpush2.xpose.msra.mxu0 0.0
        %1954 = vmatprep.subr.mxu0 0.0
        %1955 = vmatpush2.xpose.msra.mxu0 0.0
        %1956 = vmatprep.subr.mxu0 0.0
        %1957 = vmatpush2.xpose.msra.mxu0 0.0
        %1958 = vmatprep.subr.mxu0 0.0
        %1959 = vmatpush2.xpose.msra.mxu0 0.0
        %1960 = vmatprep.subr.mxu0 0.0
        %1961 = vmatpush2.xpose.msra.mxu0 0.0
        %1962 = vmatprep.subr.mxu0 0.0
        %1963 = vmatpush2.xpose.msra.mxu0 0.0
        %1964 = vmatprep.subr.mxu0 0.0
        %1965 = vmatpush2.xpose.msra.mxu0 0.0
        %1966 = vmatprep.subr.mxu0 0.0
        %1967 = vmatpush2.xpose.msra.mxu0 0.0
        %1968 = vmatprep.subr.mxu0 0.0
        %1969 = vmatpush2.xpose.msra.mxu0 0.0
        %1970 = vmatprep.subr.mxu0 0.0
        %1971 = vmatpush2.xpose.msra.mxu0 0.0
        %1972 = vmatprep.subr.mxu0 0.0
        %1973 = vmatpush2.xpose.msra.mxu0 0.0
        %1974 = vmatprep.subr.mxu0 0.0
        %1975 = vmatpush2.xpose.msra.mxu0 0.0
        %1976 = vmatprep.mubr.f32.mxu0 0.0
        %v1977 = vand.u32 %v1142, 4294901760
        %1978 = vmatmul.mubr.f32.gmra.mxu0 %v1977
        %v1979 = vpop.f32.mrf.mxu0
        %v1980 = vadd.f32 %v1906, %v1979
        %v1981 = vpop.f32.mrf.mxu0
        %1982 = vdwg.mxu0
        %1983 = vmatprep.subr.mxu0 0.0
        %1984 = vmatpush1.xpose.msra.mxu0 0.0
        %1985 = vmatprep.subr.mxu0 0.0
        %1986 = vmatpush1.xpose.msra.mxu0 0.0
        %1987 = vmatprep.subr.mxu0 0.0
        %1988 = vmatpush1.xpose.msra.mxu0 0.0
        %1989 = vmatprep.subr.mxu0 0.0
        %1990 = vmatpush1.xpose.msra.mxu0 0.0
        %1991 = vmatprep.subr.mxu0 0.0
        %1992 = vmatpush1.xpose.msra.mxu0 0.0
        %1993 = vmatprep.subr.mxu0 0.0
        %1994 = vmatpush1.xpose.msra.mxu0 0.0
        %1995 = vmatprep.subr.mxu0 0.0
        %1996 = vmatpush1.xpose.msra.mxu0 0.0
        %1997 = vmatprep.subr.mxu0 0.0
        %1998 = vmatpush1.xpose.msra.mxu0 0.0
        %1999 = vmatprep.subr.mxu0 0.0
        %2000 = vmatpush1.xpose.msra.mxu0 0.0
        %2001 = vmatprep.subr.mxu0 0.0
        %2002 = vmatpush1.xpose.msra.mxu0 0.0
        %2003 = vmatprep.subr.mxu0 0.0
        %2004 = vmatpush1.xpose.msra.mxu0 0.0
        %2005 = vmatprep.subr.mxu0 0.0
        %2006 = vmatpush1.xpose.msra.mxu0 0.0
        %2007 = vmatprep.subr.mxu0 0.0
        %2008 = vmatpush1.xpose.msra.mxu0 0.0
        %2009 = vmatprep.subr.mxu0 0.0
        %2010 = vmatpush1.xpose.msra.mxu0 0.0
        %2011 = vmatprep.subr.mxu0 0.0
        %2012 = vmatpush1.xpose.msra.mxu0 0.0
        %2013 = vmatprep.subr.mxu0 0.0
        %v2014 = vand.u32 %v1607, 4294901760
        %2015 = vmatpush1.xpose.msra.mxu0 %v2014
        %2016 = vmatprep.subr.mxu0 0.0
        %2017 = vmatpush2.xpose.msra.mxu0 0.0
        %2018 = vmatprep.subr.mxu0 0.0
        %2019 = vmatpush2.xpose.msra.mxu0 0.0
        %2020 = vmatprep.subr.mxu0 0.0
        %2021 = vmatpush2.xpose.msra.mxu0 0.0
        %2022 = vmatprep.subr.mxu0 0.0
        %2023 = vmatpush2.xpose.msra.mxu0 0.0
        %2024 = vmatprep.subr.mxu0 0.0
        %2025 = vmatpush2.xpose.msra.mxu0 0.0
        %2026 = vmatprep.subr.mxu0 0.0
        %2027 = vmatpush2.xpose.msra.mxu0 0.0
        %2028 = vmatprep.subr.mxu0 0.0
        %2029 = vmatpush2.xpose.msra.mxu0 0.0
        %2030 = vmatprep.subr.mxu0 0.0
        %2031 = vmatpush2.xpose.msra.mxu0 0.0
        %2032 = vmatprep.subr.mxu0 0.0
        %2033 = vmatpush2.xpose.msra.mxu0 0.0
        %2034 = vmatprep.subr.mxu0 0.0
        %2035 = vmatpush2.xpose.msra.mxu0 0.0
        %2036 = vmatprep.subr.mxu0 0.0
        %2037 = vmatpush2.xpose.msra.mxu0 0.0
        %2038 = vmatprep.subr.mxu0 0.0
        %2039 = vmatpush2.xpose.msra.mxu0 0.0
        %2040 = vmatprep.subr.mxu0 0.0
        %2041 = vmatpush2.xpose.msra.mxu0 0.0
        %2042 = vmatprep.subr.mxu0 0.0
        %2043 = vmatpush2.xpose.msra.mxu0 0.0
        %2044 = vmatprep.subr.mxu0 0.0
        %2045 = vmatpush2.xpose.msra.mxu0 0.0
        %2046 = vmatprep.subr.mxu0 0.0
        %2047 = vmatpush2.xpose.msra.mxu0 0.0
        %2048 = vmatprep.mubr.f32.mxu0 0.0
        %v2049 = vand.u32 %v1142, 4294901760
        %2050 = vmatmul.mubr.f32.gmra.mxu0 %v2049
        %v2051 = vpop.f32.mrf.mxu0
        %v2052 = vadd.f32 %v1980, %v2051
        %v2053 = vpop.f32.mrf.mxu0
        %2054 = vdwg.mxu0
        %v2055 = vstv %s1605
        %v2056 = vmul.f32 %v2055, %v1137
        %v2057 = vsub.f32 %v2056, %v2052
        %v2058 = vmul.f32 %v1594, 0.9
        %v2059 = vmul.f32 %v2057, 0.01
        %v2060 = vadd.f32 %v2058, %v2059
        %vm2061 = vcmask 57344
        %2062 = vst.msk [vmem:[%s204] sm:$0x1] %vm2061, %v2060
        %2063 = vst.msk [vmem:[%s210] sm:$0x1] %vm2061, %v1590
        %s2064 = sand.u32 %s103, 1
        %s2065 = scalar_lea.sflag [#allocation3], %s2064
        %s2066 = sand.u32 %s103, 1
        %s2067 = scalar_lea.vmem [#allocation2], %s2066
        %s2068 = sand.u32 %s129, 1
        %s2069 = scalar_lea.sflag [#allocation5], %s2068
        %s2070 = sand.u32 %s129, 1
        %s2071 = scalar_lea.vmem [#allocation4], %s2070
        // Predicated region
        $region33: #{tpu_custom_call.1} parent=31 // pred_check
          %p2072 = pneg %p113
        $region34: #{tpu_custom_call.1} parent=31 // pred_check_branch
          %2074 = sbr.rel (%p2072) target = $region36
        $region35: #{tpu_custom_call.1} parent=31 // pred_region
          %s2076 = ssub.s32 16, 16
          %2077 = vsyncadd %s2065, %s2076
          %s2078 = smul.addr %s22, 16
          %s2079 = scalar_lea.hbm %s3, %s2078
          %s2081 = sshll.u32 %s2067, 4
          %s2082 = int_to_ptr.vmem [resolvable:$true] %s2081
          %2084 = dma.vmem_to_hbm [thread:$0]  %s2082, 16, %s2079, %s2065
        $region36: #{tpu_custom_call.1} parent=31 // pred_fallthru
          _
        // Predicated region
        $region37: #{tpu_custom_call.1} parent=31 // pred_check
          %p2085 = pneg %p139
        $region38: #{tpu_custom_call.1} parent=31 // pred_check_branch
          %2087 = sbr.rel (%p2085) target = $region40
        $region39: #{tpu_custom_call.1} parent=31 // pred_region
          %s2089 = ssub.s32 16, 16
          %2090 = vsyncadd %s2069, %s2089
          %s2091 = smul.addr %s22, 16
          %s2092 = scalar_lea.hbm %s4, %s2091
          %s2094 = sshll.u32 %s2071, 4
          %s2095 = int_to_ptr.vmem [resolvable:$true] %s2094
          %2097 = dma.vmem_to_hbm [thread:$0]  %s2095, 16, %s2092, %s2069
        $region40: #{tpu_custom_call.1} parent=31 // pred_fallthru
          _
      $region32: #{tpu_custom_call.1} parent=5 // pred_fallthru
        _
      %p2098 = scmp.le.s32.totalorder 2, %s17
      // Predicated region
      $region41: #{tpu_custom_call.1} parent=5 // pred_check
        %p2099 = pneg %p2098
      $region42: #{tpu_custom_call.1} parent=5 // pred_check_branch
        %2101 = sbr.rel (%p2099) target = $region44
      $region43: #{tpu_custom_call.1} parent=5 // pred_region
        %s2102 = ssub.s32 %s17, 2
        // Predicated region
        $region45: #{tpu_custom_call.1} parent=43 // pred_check
          %p2103 = pneg %p119
        $region46: #{tpu_custom_call.1} parent=43 // pred_check_branch
          %2105 = sbr.rel (%p2103) target = $region48
        $region47: #{tpu_custom_call.1} parent=43 // pred_region
          %s2106 = sand.u32 %s104, 1
          %s2107 = scalar_lea.sflag [#allocation3], %s2106
          %s2108 = sand.u32 %s104, 1
          %s2109 = scalar_lea.vmem [#allocation2], %s2108
          %2110 = dma.done %s2107, 16
        $region48: #{tpu_custom_call.1} parent=43 // pred_fallthru
          _
        // Predicated region
        $region49: #{tpu_custom_call.1} parent=43 // pred_check
          %p2111 = pneg %p145
        $region50: #{tpu_custom_call.1} parent=43 // pred_check_branch
          %2113 = sbr.rel (%p2111) target = $region52
        $region51: #{tpu_custom_call.1} parent=43 // pred_region
          %s2114 = sand.u32 %s130, 1
          %s2115 = scalar_lea.sflag [#allocation5], %s2114
          %s2116 = sand.u32 %s130, 1
          %s2117 = scalar_lea.vmem [#allocation4], %s2116
          %2118 = dma.done %s2115, 16
        $region52: #{tpu_custom_call.1} parent=43 // pred_fallthru
          _
      $region44: #{tpu_custom_call.1} parent=5 // pred_fallthru
        _
    $region6: #{tpu_custom_call.1} parent=1 // loop_footer
      %s21 = sadd.s32 1, %s17
    $region7: #{tpu_custom_call.1} parent=1 // loop_footer_branch
      %16 = sbr.rel target = $region3
    $region8: #{tpu_custom_call.1} parent=1 // loop_exit
      _
    %2119 = vsyncpa [#allocation3], 1
    %s2120 = scalar_lea.sflag [#allocation3], 1
    %2121 = vsyncpa %s2120, 1
    %2122 = vsyncpa [#allocation5], 1
    %s2123 = scalar_lea.sflag [#allocation5], 1
    %2124 = vsyncpa %s2123, 1

</llo_original>
